<compile_context>
chip_gen: v6e
topology: v6e:2x2x1
jax: 0.10.0
libtpu: 0.0.40
codegen_flags: <defaults>
</compile_context>

<pallas_src>
import functools

import jax
import jax.numpy as jnp
from jax import lax
from jax.experimental import pallas as pl
from jax.experimental.pallas import tpu as pltpu

VMEM_SPEC = pl.BlockSpec(memory_space=pltpu.MemorySpace.VMEM)
BN_EPS = 1e-5                 # PyTorch BatchNorm2d default (eval-mode running stats)
VMEM_LIMIT = 32 * 1024 * 1024  # raise v5e's 16 MiB scoped default; safe on v6e/v7x


# ----------------------------------------------------------------------------
# Pallas kernels
# ----------------------------------------------------------------------------
def _conv_mm_kernel(*refs, leaky, has_residual):
    # w: (Cout_pad, K_pad) bf16 (BN scale + shift/bias folded in),
    # x: (K_pad, TM) bf16 (im2col slab + ones bias row),
    # [residual: (Cout_pad, TM) bf16], o: (Cout_pad, TM) bf16.
    if has_residual:
        w_ref, x_ref, r_ref, o_ref = refs
    else:
        w_ref, x_ref, o_ref = refs
        r_ref = None
    acc = jnp.dot(w_ref[...], x_ref[...], preferred_element_type=jnp.float32)
    if leaky:
        acc = jnp.where(acc > 0, acc, 0.1 * acc)       # LeakyReLU(0.1)
    if has_residual:
        acc = acc + r_ref[...].astype(jnp.float32)     # fused shortcut add
    o_ref[...] = acc.astype(o_ref.dtype)


def _add_kernel(a_ref, b_ref, o_ref):
    # Fallback shortcut add (only used when the add cannot be fused).
    o_ref[...] = a_ref[...] + b_ref[...]


def _yolo_kernel(x_ref, off_ref, mult_ref, o_ref):
    # x: (B, 8, tn) bf16 -- 8 = bbox rows padded to a full sublane,
    # tn (lane dim) is a multiple of 128.
    x = x_ref[...].astype(jnp.float32)
    row = lax.broadcasted_iota(jnp.int32, x.shape, dimension=1)   # bbox-attr index
    is_exp = jnp.logical_or(row == 2, row == 3)                   # w, h rows
    sig = pl.reciprocal(1.0 + jnp.exp(-x), approx=True)           # EUP, not f32 div
    ex = jnp.exp(jnp.where(is_exp, x, 0.0))       # exp only where used (no 0*inf NaN)
    y = jnp.where(is_exp, ex, sig)
    o_ref[...] = (y + off_ref[...]) * mult_ref[...]


# ----------------------------------------------------------------------------
# Layer wrappers (glue + pallas_call)
# ----------------------------------------------------------------------------
def _round_up(v, mult):
    return ((v + mult - 1) // mult) * mult


def _pick_tm(m):
    # Prefer >=2 equal 128-aligned tiles (feeds v7x's second TensorCore via the
    # "parallel" grid axis) while keeping tiles large (cap 1024 lanes) for
    # single-TC v5e/v6e; fall back to untiled when m is not cleanly splittable.
    if m % 256 == 0:
        tm = min(m // 2, 1024)
        while tm % 128 != 0 or m % tm != 0:
            tm -= 128
        return tm
    return m


def _im2col_cnhw(x, k, stride, pad):
    # x: (C, N, H, W) bf16 -> (C*k*k, N*Ho*Wo); K rows ordered (c, kh, kw) to
    # match the flattened PyTorch conv weight (Cout, Cin, kh, kw). Column order
    # is (n, ho, wo), so the matmul output reshapes straight back to CNHW.
    # TODO(synk): at real resolutions, fuse im2col into the kernel (form patches
    # from a streamed input tile in VMEM) instead of materializing col in HBM.
    c, n, h, w = x.shape
    xp = jnp.pad(x, ((0, 0), (0, 0), (pad, pad), (pad, pad)))
    ho = (h + 2 * pad - k) // stride + 1
    wo = (w + 2 * pad - k) // stride + 1
    cols = []
    for i in range(k):
        for j in range(k):
            cols.append(xp[:, :,
                           i:i + stride * (ho - 1) + 1:stride,
                           j:j + stride * (wo - 1) + 1:stride])   # (C, N, Ho, Wo)
    col = jnp.stack(cols, axis=1)                      # (C, k*k, N, Ho, Wo)
    col = col.reshape(c * k * k, n * ho * wo)          # no transpose needed
    return col, n, ho, wo


def conv_forward(x_cnhw, p, leaky, residual=None):
    w = p['w']                                  # (Cout, Cin, k, k) f32
    cout, cin, k, _ = w.shape
    col, n, ho, wo = _im2col_cnhw(x_cnhw, k, p['stride'], p['pad'])   # (K, M) bf16
    kdim, m = col.shape

    w2d = w.reshape(cout, cin * k * k)
    if p['bn']:
        scale = p['gamma'] / jnp.sqrt(p['var'] + BN_EPS)
        shift = p['beta'] - p['mean'] * scale
        w2d = w2d * scale[:, None]              # fold BN scale into weights
    else:
        shift = p['b']

    # Pad K (+1 bias row) for unmasked lane loads on w / clean bf16 sublane
    # packing on col; avoid inflating the im2col slab by more than 2x.
    k_pad = _round_up(kdim + 1, 128)
    if k_pad > 2 * (kdim + 1):
        k_pad = _round_up(kdim + 1, 16)
    cout_pad = _round_up(cout, 8)               # e.g. 14 -> 16 (no partial sublane)

    # Fold BN-shift / bias into the matmul: extra K column vs. a ones row.
    wp = jnp.zeros((cout_pad, k_pad), jnp.float32)
    wp = wp.at[:cout, :kdim].set(w2d).at[:cout, kdim].set(shift)
    wp = wp.astype(jnp.bfloat16)                # native MXU path, f32 accumulate

    colp = jnp.concatenate(
        [col,
         jnp.ones((1, m), col.dtype),                           # bias row
         jnp.zeros((k_pad - kdim - 1, m), col.dtype)], axis=0)  # zero padding

    tm = _pick_tm(m)
    grid = (pl.cdiv(m, tm),)
    in_specs = [
        pl.BlockSpec((cout_pad, k_pad), lambda i: (0, 0)),
        pl.BlockSpec((k_pad, tm), lambda i: (0, i)),
    ]
    args = [wp, colp]
    has_residual = residual is not None
    if has_residual:
        r2 = residual.reshape(residual.shape[0], m).astype(jnp.bfloat16)
        if cout_pad > r2.shape[0]:
            r2 = jnp.concatenate(
                [r2, jnp.zeros((cout_pad - r2.shape[0], m), r2.dtype)], axis=0)
        in_specs.append(pl.BlockSpec((cout_pad, tm), lambda i: (0, i)))
        args.append(r2)

    out = pl.pallas_call(
        functools.partial(_conv_mm_kernel, leaky=leaky, has_residual=has_residual),
        out_shape=jax.ShapeDtypeStruct((cout_pad, m), jnp.bfloat16),
        grid=grid,
        in_specs=in_specs,
        out_specs=pl.BlockSpec((cout_pad, tm), lambda i: (0, i)),
        compiler_params=pltpu.CompilerParams(
            dimension_semantics=("parallel",),
            vmem_limit_bytes=VMEM_LIMIT),
    )(*args)
    return out[:cout].reshape(cout, n, ho, wo)  # pure slice+reshape, channel-major


def shortcut_add(a, b):
    # Fallback path (only used when the add cannot be fused into the previous
    # conv). Flatten to (C, N*H*W) so the lane dim is 128-aligned.
    c = a.shape[0]
    a2 = a.reshape(c, -1)
    b2 = b.reshape(c, -1)
    out = pl.pallas_call(
        _add_kernel,
        out_shape=jax.ShapeDtypeStruct(a2.shape, a2.dtype),
        in_specs=[VMEM_SPEC] * 2,
        out_specs=VMEM_SPEC,
    )(a2, b2)
    return out.reshape(a.shape)


def upsample_nearest2x(x_cnhw):
    # nearest-neighbor 2x upsample: pure data replication, kept in JAX glue.
    # TODO(synk): fold the replication into the consumer conv's im2col gather
    # to avoid materializing the 2x-resolution tensor through HBM.
    return jnp.repeat(jnp.repeat(x_cnhw, 2, axis=2), 2, axis=3)


def yolo_transform(x_cnhw, inp_dim, anchors, num_classes):
    # Mirrors the standard YOLO predict_transform, computed in a lane-dense
    # (B, bbox, npred) layout (bbox padded to 8 rows) and transposed back after.
    c, n, g, _ = x_cnhw.shape
    stride = inp_dim // g
    a = len(anchors)
    bbox = 5 + num_classes
    assert c == a * bbox
    npred = g * g * a
    bb8 = 8                                     # pad bbox rows to a full sublane

    # (C,N,G,G) -> (N, bbox, G*G*A) with pred index = cell*A + anchor (darknet order)
    xr = x_cnhw.reshape(a, bbox, n, g * g)
    pred_t = xr.transpose(2, 1, 3, 0).reshape(n, bbox, npred)
    pred_p = jnp.zeros((n, bb8, npred), x_cnhw.dtype).at[:, :bbox, :].set(pred_t)

    cells = jnp.arange(g * g)
    xo = jnp.repeat((cells % g).astype(jnp.float32), a)
    yo = jnp.repeat((cells // g).astype(jnp.float32), a)
    anc = jnp.array(anchors, dtype=jnp.float32)           # (A, 2) original px
    aw = jnp.tile(anc[:, 0], g * g)
    ah = jnp.tile(anc[:, 1], g * g)

    off = jnp.zeros((bb8, npred), jnp.float32).at[0].set(xo).at[1].set(yo)
    mult = jnp.ones((bb8, npred), jnp.float32)
    mult = (mult.at[0].set(float(stride)).at[1].set(float(stride))
                .at[2].set(aw).at[3].set(ah))

    tn = _pick_tm(npred)
    grid = (pl.cdiv(npred, tn),)
    out = pl.pallas_call(
        _yolo_kernel,
        out_shape=jax.ShapeDtypeStruct((n, bb8, npred), jnp.float32),
        grid=grid,
        in_specs=[pl.BlockSpec((n, bb8, tn), lambda i: (0, 0, i)),
                  pl.BlockSpec((bb8, tn), lambda i: (0, i)),
                  pl.BlockSpec((bb8, tn), lambda i: (0, i))],
        out_specs=pl.BlockSpec((n, bb8, tn), lambda i: (0, 0, i)),
        compiler_params=pltpu.CompilerParams(
            dimension_semantics=("parallel",),
            vmem_limit_bytes=VMEM_LIMIT),
    )(pred_p, off, mult)
    return out[:, :bbox, :].transpose(0, 2, 1)             # (N, npred, bbox)


# ----------------------------------------------------------------------------
# Synthetic YOLO-style config (in-script replacement for parse_cfg)
# ----------------------------------------------------------------------------
BLOCKS = [
    {'type': 'net', 'height': 16, 'width': 16, 'channels': 3},
    {'type': 'convolutional', 'batch_normalize': 1, 'filters': 8,  'size': 3, 'stride': 1, 'pad': 1, 'activation': 'leaky'},   # 0
    {'type': 'convolutional', 'batch_normalize': 1, 'filters': 16, 'size': 3, 'stride': 2, 'pad': 1, 'activation': 'leaky'},   # 1
    {'type': 'convolutional', 'batch_normalize': 1, 'filters': 16, 'size': 1, 'stride': 1, 'pad': 1, 'activation': 'leaky'},   # 2
    {'type': 'convolutional', 'batch_normalize': 1, 'filters': 16, 'size': 3, 'stride': 1, 'pad': 1, 'activation': 'leaky'},   # 3
    {'type': 'shortcut', 'from': -2, 'activation': 'linear'},                                                                  # 4
    {'type': 'convolutional', 'filters': 14, 'size': 1, 'stride': 1, 'pad': 1, 'activation': 'linear'},                        # 5
    {'type': 'yolo', 'mask': '0,1', 'anchors': '10,14, 23,27, 37,58', 'classes': 2},                                           # 6
    {'type': 'route', 'layers': '-3'},                                                                                         # 7
    {'type': 'convolutional', 'batch_normalize': 1, 'filters': 8, 'size': 1, 'stride': 1, 'pad': 1, 'activation': 'leaky'},    # 8
    {'type': 'upsample', 'stride': 2},                                                                                         # 9
    {'type': 'route', 'layers': '-1,-10'},                                                                                     # 10
    {'type': 'convolutional', 'filters': 14, 'size': 1, 'stride': 1, 'pad': 1, 'activation': 'linear'},                        # 11
    {'type': 'yolo', 'mask': '1,2', 'anchors': '10,14, 23,27, 37,58', 'classes': 2},                                           # 12
]
# TODO(synk): parse_cfg/loadWeights read files; replaced by in-script config + random init.


def init_params(blocks, key):
    params = []
    prev = int(blocks[0]['channels'])
    out_filters = []
    for i, blk in enumerate(blocks[1:]):
        t = blk['type']
        p = {}
        filters = prev
        if t == 'convolutional':
            k = int(blk['size'])
            f = int(blk['filters'])
            bn = int(blk.get('batch_normalize', 0))
            key, k1, k2, k3, k4, k5 = jax.random.split(key, 6)
            p = {
                'w': 0.1 * jax.random.normal(k1, (f, prev, k, k), jnp.float32),
                'stride': int(blk['stride']),
                'pad': (k - 1) // 2 if int(blk['pad']) else 0,
                'bn': bool(bn),
            }
            if bn:
                p['gamma'] = 1.0 + 0.1 * jax.random.normal(k2, (f,), jnp.float32)
                p['beta'] = 0.1 * jax.random.normal(k3, (f,), jnp.float32)
                p['mean'] = 0.1 * jax.random.normal(k4, (f,), jnp.float32)
                p['var'] = jnp.abs(1.0 + 0.1 * jax.random.normal(k5, (f,), jnp.float32))
            else:
                p['b'] = 0.1 * jax.random.normal(k2, (f,), jnp.float32)
            filters = f
        elif t == 'route':
            layers = [int(a) for a in str(blk['layers']).split(',')]
            layers = [l if l < 0 else l - i for l in layers]
            if len(layers) == 1:
                filters = out_filters[i + layers[0]]
            else:
                filters = out_filters[i + layers[0]] + out_filters[i + layers[1]]
        params.append(p)
        prev = filters
        out_filters.append(filters)
    return params


def _externally_referenced(blocks):
    # Layer indices whose raw outputs are consumed by a route or by a
    # shortcut's `from` operand.  A shortcut's implicit `index-1` operand is
    # deliberately excluded: that is the operand we may fuse the add into.
    refs = set()
    mods = blocks[1:]
    for idx, blk in enumerate(mods):
        t = blk['type']
        if t == 'route':
            layers = [int(a) for a in str(blk['layers']).split(',')]
            for l in layers:
                if l > 0:
                    l -= idx
                refs.add(idx + l)
        elif t == 'shortcut':
            refs.add(idx + int(blk['from']))
    return refs


def neuralnet_forward(blocks, params, x_nchw):
    # Internal channel-major CNHW, bf16 activations end-to-end.
    x = x_nchw.transpose(1, 0, 2, 3).astype(jnp.bfloat16)
    mods = blocks[1:]
    refs = _externally_referenced(blocks)
    outputs = {}
    detections = None
    inp_dim = int(blocks[0]['height'])
    fused_shortcuts = set()
    for index, blk in enumerate(mods):
        t = blk['type']
        if t == 'convolutional':
            residual = None
            # Fuse a following shortcut's add into this conv's epilogue when
            # the raw conv output is not consumed anywhere else.
            if (index + 1 < len(mods) and mods[index + 1]['type'] == 'shortcut'
                    and index not in refs):
                f = int(mods[index + 1]['from'])
                residual = outputs[index + 1 + f]
                fused_shortcuts.add(index + 1)
            x = conv_forward(x, params[index], blk['activation'] == 'leaky', residual)
        elif t == 'upsample':
            x = upsample_nearest2x(x)
        elif t == 'route':
            layers = [int(a) for a in str(blk['layers']).split(',')]
            if layers[0] > 0:
                layers[0] -= index
            if len(layers) == 1:
                x = outputs[index + layers[0]]
            else:
                if layers[1] > 0:
                    layers[1] -= index
                x = jnp.concatenate(
                    [outputs[index + layers[0]], outputs[index + layers[1]]], axis=0)
        elif t == 'shortcut':
            if index not in fused_shortcuts:
                f = int(blk['from'])
                x = shortcut_add(outputs[index - 1], outputs[index + f])
            # else: the add was already applied in the previous conv's epilogue.
        elif t == 'yolo':
            mask = [int(mm) for mm in blk['mask'].split(',')]
            a_flat = [int(v) for v in blk['anchors'].split(',')]
            anchors = [(a_flat[j], a_flat[j + 1]) for j in range(0, len(a_flat), 2)]
            anchors = [anchors[mm] for mm in mask]
            x = yolo_transform(x, inp_dim, anchors, int(blk['classes']))
            detections = x if detections is None else jnp.concatenate([detections, x], axis=1)
        outputs[index] = x
    return detections


if __name__ == "__main__":
    key = jax.random.PRNGKey(0)
    kx, kp = jax.random.split(key)
    x = jax.random.normal(kx, (2, 3, 16, 16), jnp.float32)   # NCHW, like PyTorch
    params = init_params(BLOCKS, kp)

    # One jitted executable for the whole forward (params/config closed over).
    forward = jax.jit(lambda inp: neuralnet_forward(BLOCKS, params, inp))
    det = forward(x)
    det = jax.block_until_ready(det)

    # 8x8 grid * 2 anchors + 16x16 grid * 2 anchors = 640 predictions, 5+2 attrs
    assert det.shape == (2, 640, 7), det.shape
    assert bool(jnp.all(jnp.isfinite(det)))
    print("KERNEL_OK")
</pallas_src>

<mosaic_0001>
module attributes {stable_mosaic.version = 11 : i64} {
  func.func @_conv_mm_kernel(%arg0: i32, %arg1: memref<8x32xbf16, #tpu.memory_space<vmem>>, %arg2: memref<32x256xbf16, #tpu.memory_space<vmem>>, %arg3: memref<8x256xbf16, #tpu.memory_space<vmem>>) attributes {dimension_semantics = [#tpu.dimension_semantics<parallel>], iteration_bounds = array<i64: 2>, scalar_prefetch = 0 : i64, scratch_operands = 0 : i64, tpu.core_type = #tpu.core_type<tc>, window_params = [{pipeline_mode = #tpu.pipeline_mode<synchronous>, transform_indices = @transform_0, window_bounds = array<i64: 8, 32>}, {transform_indices = @transform_1, window_bounds = array<i64: 32, 256>}, {transform_indices = @transform_2, window_bounds = array<i64: 8, 256>}]} {
    %c0 = arith.constant 0 : index
    %c0_0 = arith.constant 0 : index
    %0 = vector.load %arg1[%c0, %c0_0] : memref<8x32xbf16, #tpu.memory_space<vmem>>, vector<8x32xbf16>
    %c0_1 = arith.constant 0 : index
    %c0_2 = arith.constant 0 : index
    %1 = vector.load %arg2[%c0_1, %c0_2] : memref<32x256xbf16, #tpu.memory_space<vmem>>, vector<32x256xbf16>
    %cst = arith.constant dense<0.000000e+00> : vector<8x256xf32>
    %2 = tpu.matmul %0, %1, %cst {dimension_numbers = #tpu.dot_dimension_numbers<[1], [0], [0], [1], [0, 0, 1, 1], [], []>} : vector<8x32xbf16>, vector<32x256xbf16>, vector<8x256xf32> -> vector<8x256xf32>
    %cst_3 = arith.constant 0.000000e+00 : f32
    %3 = vector.broadcast %cst_3 : f32 to vector<8x256xf32>
    %4 = arith.cmpf ogt, %2, %3 : vector<8x256xf32>
    %cst_4 = arith.constant 1.000000e-01 : f32
    %5 = vector.broadcast %cst_4 : f32 to vector<8x256xf32>
    %6 = arith.mulf %5, %2 : vector<8x256xf32>
    %7 = arith.select %4, %2, %6 : vector<8x256xi1>, vector<8x256xf32>
    %8 = arith.truncf %7 : vector<8x256xf32> to vector<8x256xbf16>
    %c0_5 = arith.constant 0 : index
    %c0_6 = arith.constant 0 : index
    %9 = vector.load %arg3[%c0_5, %c0_6] : memref<8x256xbf16, #tpu.memory_space<vmem>>, vector<8x256xbf16>
    tpu.vector_store %arg3[%c0_5, %c0_6], %8 {strides = array<i32>} : memref<8x256xbf16, #tpu.memory_space<vmem>>, vector<8x256xbf16>,
    return
  }
  func.func @transform_0(%arg0: i32) -> (i32, i32) {
    %c0_i32 = arith.constant 0 : i32
    %c0_i32_0 = arith.constant 0 : i32
    %c0_i32_1 = arith.constant 0 : i32
    return %c0_i32, %c0_i32_0 : i32, i32
  }
  func.func @transform_1(%arg0: i32) -> (i32, i32) {
    %c0_i32 = arith.constant 0 : i32
    %c0_i32_0 = arith.constant 0 : i32
    return %c0_i32, %arg0 : i32, i32
  }
  func.func @transform_2(%arg0: i32) -> (i32, i32) {
    %c0_i32 = arith.constant 0 : i32
    %c0_i32_0 = arith.constant 0 : i32
    return %c0_i32, %arg0 : i32, i32
  }
}

module attributes {stable_mosaic.version = 11 : i64} {
  func.func @_conv_mm_kernel(%arg0: i32, %arg1: memref<16x128xbf16, #tpu.memory_space<vmem>>, %arg2: memref<128x128xbf16, #tpu.memory_space<vmem>>, %arg3: memref<16x128xbf16, #tpu.memory_space<vmem>>) attributes {dimension_semantics = [#tpu.dimension_semantics<parallel>], iteration_bounds = array<i64: 1>, scalar_prefetch = 0 : i64, scratch_operands = 0 : i64, tpu.core_type = #tpu.core_type<tc>, window_params = [{pipeline_mode = #tpu.pipeline_mode<synchronous>, transform_indices = @transform_0, window_bounds = array<i64: 16, 128>}, {transform_indices = @transform_1, window_bounds = array<i64: 128, 128>}, {transform_indices = @transform_2, window_bounds = array<i64: 16, 128>}]} {
    %c0 = arith.constant 0 : index
    %c0_0 = arith.constant 0 : index
    %0 = vector.load %arg1[%c0, %c0_0] : memref<16x128xbf16, #tpu.memory_space<vmem>>, vector<16x128xbf16>
    %c0_1 = arith.constant 0 : index
    %c0_2 = arith.constant 0 : index
    %1 = vector.load %arg2[%c0_1, %c0_2] : memref<128x128xbf16, #tpu.memory_space<vmem>>, vector<128x128xbf16>
    %cst = arith.constant dense<0.000000e+00> : vector<16x128xf32>
    %2 = tpu.matmul %0, %1, %cst {dimension_numbers = #tpu.dot_dimension_numbers<[1], [0], [0], [1], [0, 0, 1, 1], [], []>} : vector<16x128xbf16>, vector<128x128xbf16>, vector<16x128xf32> -> vector<16x128xf32>
    %cst_3 = arith.constant 0.000000e+00 : f32
    %3 = vector.broadcast %cst_3 : f32 to vector<16x128xf32>
    %4 = arith.cmpf ogt, %2, %3 : vector<16x128xf32>
    %cst_4 = arith.constant 1.000000e-01 : f32
    %5 = vector.broadcast %cst_4 : f32 to vector<16x128xf32>
    %6 = arith.mulf %5, %2 : vector<16x128xf32>
    %7 = arith.select %4, %2, %6 : vector<16x128xi1>, vector<16x128xf32>
    %8 = arith.truncf %7 : vector<16x128xf32> to vector<16x128xbf16>
    %c0_5 = arith.constant 0 : index
    %c0_6 = arith.constant 0 : index
    %9 = vector.load %arg3[%c0_5, %c0_6] : memref<16x128xbf16, #tpu.memory_space<vmem>>, vector<16x128xbf16>
    tpu.vector_store %arg3[%c0_5, %c0_6], %8 {strides = array<i32>} : memref<16x128xbf16, #tpu.memory_space<vmem>>, vector<16x128xbf16>,
    return
  }
  func.func @transform_0(%arg0: i32) -> (i32, i32) {
    %c0_i32 = arith.constant 0 : i32
    %c0_i32_0 = arith.constant 0 : i32
    %c0_i32_1 = arith.constant 0 : i32
    return %c0_i32, %c0_i32_0 : i32, i32
  }
  func.func @transform_1(%arg0: i32) -> (i32, i32) {
    %c0_i32 = arith.constant 0 : i32
    %c0_i32_0 = arith.constant 0 : i32
    return %c0_i32, %arg0 : i32, i32
  }
  func.func @transform_2(%arg0: i32) -> (i32, i32) {
    %c0_i32 = arith.constant 0 : i32
    %c0_i32_0 = arith.constant 0 : i32
    return %c0_i32, %arg0 : i32, i32
  }
}

module attributes {stable_mosaic.version = 11 : i64} {
  func.func @_conv_mm_kernel(%arg0: i32, %arg1: memref<16x32xbf16, #tpu.memory_space<vmem>>, %arg2: memref<32x128xbf16, #tpu.memory_space<vmem>>, %arg3: memref<16x128xbf16, #tpu.memory_space<vmem>>) attributes {dimension_semantics = [#tpu.dimension_semantics<parallel>], iteration_bounds = array<i64: 1>, scalar_prefetch = 0 : i64, scratch_operands = 0 : i64, tpu.core_type = #tpu.core_type<tc>, window_params = [{pipeline_mode = #tpu.pipeline_mode<synchronous>, transform_indices = @transform_0, window_bounds = array<i64: 16, 32>}, {transform_indices = @transform_1, window_bounds = array<i64: 32, 128>}, {transform_indices = @transform_2, window_bounds = array<i64: 16, 128>}]} {
    %c0 = arith.constant 0 : index
    %c0_0 = arith.constant 0 : index
    %0 = vector.load %arg1[%c0, %c0_0] : memref<16x32xbf16, #tpu.memory_space<vmem>>, vector<16x32xbf16>
    %c0_1 = arith.constant 0 : index
    %c0_2 = arith.constant 0 : index
    %1 = vector.load %arg2[%c0_1, %c0_2] : memref<32x128xbf16, #tpu.memory_space<vmem>>, vector<32x128xbf16>
    %cst = arith.constant dense<0.000000e+00> : vector<16x128xf32>
    %2 = tpu.matmul %0, %1, %cst {dimension_numbers = #tpu.dot_dimension_numbers<[1], [0], [0], [1], [0, 0, 1, 1], [], []>} : vector<16x32xbf16>, vector<32x128xbf16>, vector<16x128xf32> -> vector<16x128xf32>
    %cst_3 = arith.constant 0.000000e+00 : f32
    %3 = vector.broadcast %cst_3 : f32 to vector<16x128xf32>
    %4 = arith.cmpf ogt, %2, %3 : vector<16x128xf32>
    %cst_4 = arith.constant 1.000000e-01 : f32
    %5 = vector.broadcast %cst_4 : f32 to vector<16x128xf32>
    %6 = arith.mulf %5, %2 : vector<16x128xf32>
    %7 = arith.select %4, %2, %6 : vector<16x128xi1>, vector<16x128xf32>
    %8 = arith.truncf %7 : vector<16x128xf32> to vector<16x128xbf16>
    %c0_5 = arith.constant 0 : index
    %c0_6 = arith.constant 0 : index
    %9 = vector.load %arg3[%c0_5, %c0_6] : memref<16x128xbf16, #tpu.memory_space<vmem>>, vector<16x128xbf16>
    tpu.vector_store %arg3[%c0_5, %c0_6], %8 {strides = array<i32>} : memref<16x128xbf16, #tpu.memory_space<vmem>>, vector<16x128xbf16>,
    return
  }
  func.func @transform_0(%arg0: i32) -> (i32, i32) {
    %c0_i32 = arith.constant 0 : i32
    %c0_i32_0 = arith.constant 0 : i32
    %c0_i32_1 = arith.constant 0 : i32
    return %c0_i32, %c0_i32_0 : i32, i32
  }
  func.func @transform_1(%arg0: i32) -> (i32, i32) {
    %c0_i32 = arith.constant 0 : i32
    %c0_i32_0 = arith.constant 0 : i32
    return %c0_i32, %arg0 : i32, i32
  }
  func.func @transform_2(%arg0: i32) -> (i32, i32) {
    %c0_i32 = arith.constant 0 : i32
    %c0_i32_0 = arith.constant 0 : i32
    return %c0_i32, %arg0 : i32, i32
  }
}

module attributes {stable_mosaic.version = 11 : i64} {
  func.func @_conv_mm_kernel(%arg0: i32, %arg1: memref<16x256xbf16, #tpu.memory_space<vmem>>, %arg2: memref<256x128xbf16, #tpu.memory_space<vmem>>, %arg3: memref<16x128xbf16, #tpu.memory_space<vmem>>, %arg4: memref<16x128xbf16, #tpu.memory_space<vmem>>) attributes {dimension_semantics = [#tpu.dimension_semantics<parallel>], iteration_bounds = array<i64: 1>, scalar_prefetch = 0 : i64, scratch_operands = 0 : i64, tpu.core_type = #tpu.core_type<tc>, window_params = [{pipeline_mode = #tpu.pipeline_mode<synchronous>, transform_indices = @transform_0, window_bounds = array<i64: 16, 256>}, {transform_indices = @transform_1, window_bounds = array<i64: 256, 128>}, {transform_indices = @transform_2, window_bounds = array<i64: 16, 128>}, {transform_indices = @transform_3, window_bounds = array<i64: 16, 128>}]} {
    %c0 = arith.constant 0 : index
    %c0_0 = arith.constant 0 : index
    %0 = vector.load %arg1[%c0, %c0_0] : memref<16x256xbf16, #tpu.memory_space<vmem>>, vector<16x256xbf16>
    %c0_1 = arith.constant 0 : index
    %c0_2 = arith.constant 0 : index
    %1 = vector.load %arg2[%c0_1, %c0_2] : memref<256x128xbf16, #tpu.memory_space<vmem>>, vector<256x128xbf16>
    %cst = arith.constant dense<0.000000e+00> : vector<16x128xf32>
    %2 = tpu.matmul %0, %1, %cst {dimension_numbers = #tpu.dot_dimension_numbers<[1], [0], [0], [1], [0, 0, 1, 1], [], []>} : vector<16x256xbf16>, vector<256x128xbf16>, vector<16x128xf32> -> vector<16x128xf32>
    %cst_3 = arith.constant 0.000000e+00 : f32
    %3 = vector.broadcast %cst_3 : f32 to vector<16x128xf32>
    %4 = arith.cmpf ogt, %2, %3 : vector<16x128xf32>
    %cst_4 = arith.constant 1.000000e-01 : f32
    %5 = vector.broadcast %cst_4 : f32 to vector<16x128xf32>
    %6 = arith.mulf %5, %2 : vector<16x128xf32>
    %7 = arith.select %4, %2, %6 : vector<16x128xi1>, vector<16x128xf32>
    %c0_5 = arith.constant 0 : index
    %c0_6 = arith.constant 0 : index
    %8 = vector.load %arg3[%c0_5, %c0_6] : memref<16x128xbf16, #tpu.memory_space<vmem>>, vector<16x128xbf16>
    %9 = arith.extf %8 : vector<16x128xbf16> to vector<16x128xf32>
    %10 = arith.addf %7, %9 : vector<16x128xf32>
    %11 = arith.truncf %10 : vector<16x128xf32> to vector<16x128xbf16>
    %c0_7 = arith.constant 0 : index
    %c0_8 = arith.constant 0 : index
    %12 = vector.load %arg4[%c0_7, %c0_8] : memref<16x128xbf16, #tpu.memory_space<vmem>>, vector<16x128xbf16>
    tpu.vector_store %arg4[%c0_7, %c0_8], %11 {strides = array<i32>} : memref<16x128xbf16, #tpu.memory_space<vmem>>, vector<16x128xbf16>,
    return
  }
  func.func @transform_0(%arg0: i32) -> (i32, i32) {
    %c0_i32 = arith.constant 0 : i32
    %c0_i32_0 = arith.constant 0 : i32
    %c0_i32_1 = arith.constant 0 : i32
    return %c0_i32, %c0_i32_0 : i32, i32
  }
  func.func @transform_1(%arg0: i32) -> (i32, i32) {
    %c0_i32 = arith.constant 0 : i32
    %c0_i32_0 = arith.constant 0 : i32
    return %c0_i32, %arg0 : i32, i32
  }
  func.func @transform_2(%arg0: i32) -> (i32, i32) {
    %c0_i32 = arith.constant 0 : i32
    %c0_i32_0 = arith.constant 0 : i32
    return %c0_i32, %arg0 : i32, i32
  }
  func.func @transform_3(%arg0: i32) -> (i32, i32) {
    %c0_i32 = arith.constant 0 : i32
    %c0_i32_0 = arith.constant 0 : i32
    return %c0_i32, %arg0 : i32, i32
  }
}

module attributes {stable_mosaic.version = 11 : i64} {
  func.func @_conv_mm_kernel(%arg0: i32, %arg1: memref<8x32xbf16, #tpu.memory_space<vmem>>, %arg2: memref<32x128xbf16, #tpu.memory_space<vmem>>, %arg3: memref<8x128xbf16, #tpu.memory_space<vmem>>) attributes {dimension_semantics = [#tpu.dimension_semantics<parallel>], iteration_bounds = array<i64: 1>, scalar_prefetch = 0 : i64, scratch_operands = 0 : i64, tpu.core_type = #tpu.core_type<tc>, window_params = [{pipeline_mode = #tpu.pipeline_mode<synchronous>, transform_indices = @transform_0, window_bounds = array<i64: 8, 32>}, {transform_indices = @transform_1, window_bounds = array<i64: 32, 128>}, {transform_indices = @transform_2, window_bounds = array<i64: 8, 128>}]} {
    %c0 = arith.constant 0 : index
    %c0_0 = arith.constant 0 : index
    %0 = vector.load %arg1[%c0, %c0_0] : memref<8x32xbf16, #tpu.memory_space<vmem>>, vector<8x32xbf16>
    %c0_1 = arith.constant 0 : index
    %c0_2 = arith.constant 0 : index
    %1 = vector.load %arg2[%c0_1, %c0_2] : memref<32x128xbf16, #tpu.memory_space<vmem>>, vector<32x128xbf16>
    %cst = arith.constant dense<0.000000e+00> : vector<8x128xf32>
    %2 = tpu.matmul %0, %1, %cst {dimension_numbers = #tpu.dot_dimension_numbers<[1], [0], [0], [1], [0, 0, 1, 1], [], []>} : vector<8x32xbf16>, vector<32x128xbf16>, vector<8x128xf32> -> vector<8x128xf32>
    %cst_3 = arith.constant 0.000000e+00 : f32
    %3 = vector.broadcast %cst_3 : f32 to vector<8x128xf32>
    %4 = arith.cmpf ogt, %2, %3 : vector<8x128xf32>
    %cst_4 = arith.constant 1.000000e-01 : f32
    %5 = vector.broadcast %cst_4 : f32 to vector<8x128xf32>
    %6 = arith.mulf %5, %2 : vector<8x128xf32>
    %7 = arith.select %4, %2, %6 : vector<8x128xi1>, vector<8x128xf32>
    %8 = arith.truncf %7 : vector<8x128xf32> to vector<8x128xbf16>
    %c0_5 = arith.constant 0 : index
    %c0_6 = arith.constant 0 : index
    %9 = vector.load %arg3[%c0_5, %c0_6] : memref<8x128xbf16, #tpu.memory_space<vmem>>, vector<8x128xbf16>
    tpu.vector_store %arg3[%c0_5, %c0_6], %8 {strides = array<i32>} : memref<8x128xbf16, #tpu.memory_space<vmem>>, vector<8x128xbf16>,
    return
  }
  func.func @transform_0(%arg0: i32) -> (i32, i32) {
    %c0_i32 = arith.constant 0 : i32
    %c0_i32_0 = arith.constant 0 : i32
    %c0_i32_1 = arith.constant 0 : i32
    return %c0_i32, %c0_i32_0 : i32, i32
  }
  func.func @transform_1(%arg0: i32) -> (i32, i32) {
    %c0_i32 = arith.constant 0 : i32
    %c0_i32_0 = arith.constant 0 : i32
    return %c0_i32, %arg0 : i32, i32
  }
  func.func @transform_2(%arg0: i32) -> (i32, i32) {
    %c0_i32 = arith.constant 0 : i32
    %c0_i32_0 = arith.constant 0 : i32
    return %c0_i32, %arg0 : i32, i32
  }
}

module attributes {stable_mosaic.version = 11 : i64} {
  func.func @_conv_mm_kernel(%arg0: i32, %arg1: memref<16x32xbf16, #tpu.memory_space<vmem>>, %arg2: memref<32x256xbf16, #tpu.memory_space<vmem>>, %arg3: memref<16x256xbf16, #tpu.memory_space<vmem>>) attributes {dimension_semantics = [#tpu.dimension_semantics<parallel>], iteration_bounds = array<i64: 2>, scalar_prefetch = 0 : i64, scratch_operands = 0 : i64, tpu.core_type = #tpu.core_type<tc>, window_params = [{pipeline_mode = #tpu.pipeline_mode<synchronous>, transform_indices = @transform_0, window_bounds = array<i64: 16, 32>}, {transform_indices = @transform_1, window_bounds = array<i64: 32, 256>}, {transform_indices = @transform_2, window_bounds = array<i64: 16, 256>}]} {
    %c0 = arith.constant 0 : index
    %c0_0 = arith.constant 0 : index
    %0 = vector.load %arg1[%c0, %c0_0] : memref<16x32xbf16, #tpu.memory_space<vmem>>, vector<16x32xbf16>
    %c0_1 = arith.constant 0 : index
    %c0_2 = arith.constant 0 : index
    %1 = vector.load %arg2[%c0_1, %c0_2] : memref<32x256xbf16, #tpu.memory_space<vmem>>, vector<32x256xbf16>
    %cst = arith.constant dense<0.000000e+00> : vector<16x256xf32>
    %2 = tpu.matmul %0, %1, %cst {dimension_numbers = #tpu.dot_dimension_numbers<[1], [0], [0], [1], [0, 0, 1, 1], [], []>} : vector<16x32xbf16>, vector<32x256xbf16>, vector<16x256xf32> -> vector<16x256xf32>
    %3 = arith.truncf %2 : vector<16x256xf32> to vector<16x256xbf16>
    %c0_3 = arith.constant 0 : index
    %c0_4 = arith.constant 0 : index
    %4 = vector.load %arg3[%c0_3, %c0_4] : memref<16x256xbf16, #tpu.memory_space<vmem>>, vector<16x256xbf16>
    tpu.vector_store %arg3[%c0_3, %c0_4], %3 {strides = array<i32>} : memref<16x256xbf16, #tpu.memory_space<vmem>>, vector<16x256xbf16>,
    return
  }
  func.func @transform_0(%arg0: i32) -> (i32, i32) {
    %c0_i32 = arith.constant 0 : i32
    %c0_i32_0 = arith.constant 0 : i32
    %c0_i32_1 = arith.constant 0 : i32
    return %c0_i32, %c0_i32_0 : i32, i32
  }
  func.func @transform_1(%arg0: i32) -> (i32, i32) {
    %c0_i32 = arith.constant 0 : i32
    %c0_i32_0 = arith.constant 0 : i32
    return %c0_i32, %arg0 : i32, i32
  }
  func.func @transform_2(%arg0: i32) -> (i32, i32) {
    %c0_i32 = arith.constant 0 : i32
    %c0_i32_0 = arith.constant 0 : i32
    return %c0_i32, %arg0 : i32, i32
  }
}

module attributes {stable_mosaic.version = 11 : i64} {
  func.func @_yolo_kernel(%arg0: i32, %arg1: memref<2x8x256xbf16, #tpu.memory_space<vmem>>, %arg2: memref<8x256xf32, #tpu.memory_space<vmem>>, %arg3: memref<8x256xf32, #tpu.memory_space<vmem>>, %arg4: memref<2x8x256xf32, #tpu.memory_space<vmem>>) attributes {dimension_semantics = [#tpu.dimension_semantics<parallel>], iteration_bounds = array<i64: 2>, scalar_prefetch = 0 : i64, scratch_operands = 0 : i64, tpu.core_type = #tpu.core_type<tc>, window_params = [{transform_indices = @transform_0, window_bounds = array<i64: 2, 8, 256>}, {transform_indices = @transform_1, window_bounds = array<i64: 8, 256>}, {transform_indices = @transform_2, window_bounds = array<i64: 8, 256>}, {transform_indices = @transform_3, window_bounds = array<i64: 2, 8, 256>}]} {
    %c0 = arith.constant 0 : index
    %c0_0 = arith.constant 0 : index
    %c0_1 = arith.constant 0 : index
    %0 = vector.load %arg1[%c0, %c0_0, %c0_1] : memref<2x8x256xbf16, #tpu.memory_space<vmem>>, vector<2x8x256xbf16>
    %1 = arith.extf %0 : vector<2x8x256xbf16> to vector<2x8x256xf32>
    %2 = tpu.iota {dimensions = array<i32: 1>} : vector<2x8x256xi32>
    %c2_i32 = arith.constant 2 : i32
    %3 = vector.broadcast %c2_i32 : i32 to vector<2x8x256xi32>
    %4 = arith.cmpi eq, %2, %3 : vector<2x8x256xi32>
    %c3_i32 = arith.constant 3 : i32
    %5 = vector.broadcast %c3_i32 : i32 to vector<2x8x256xi32>
    %6 = arith.cmpi eq, %2, %5 : vector<2x8x256xi32>
    %7 = arith.ori %4, %6 : vector<2x8x256xi1>
    %cst = arith.constant 0.000000e+00 : f32
    %8 = vector.broadcast %cst : f32 to vector<2x8x256xf32>
    %9 = arith.subf %8, %1 : vector<2x8x256xf32>
    %10 = math.exp %9 : vector<2x8x256xf32>
    %cst_2 = arith.constant 1.000000e+00 : f32
    %11 = vector.broadcast %cst_2 : f32 to vector<2x8x256xf32>
    %12 = arith.addf %11, %10 : vector<2x8x256xf32>
    %13 = tpu.reciprocal %12 {approx = true} : vector<2x8x256xf32> -> vector<2x8x256xf32>
    %cst_3 = arith.constant 0.000000e+00 : f32
    %14 = vector.broadcast %cst_3 : f32 to vector<2x8x256xf32>
    %15 = arith.select %7, %1, %14 : vector<2x8x256xi1>, vector<2x8x256xf32>
    %16 = math.exp %15 : vector<2x8x256xf32>
    %17 = arith.select %7, %16, %13 : vector<2x8x256xi1>, vector<2x8x256xf32>
    %c0_4 = arith.constant 0 : index
    %c0_5 = arith.constant 0 : index
    %18 = vector.load %arg2[%c0_4, %c0_5] : memref<8x256xf32, #tpu.memory_space<vmem>>, vector<8x256xf32>
    %19 = vector.shape_cast %18 : vector<8x256xf32> to vector<1x8x256xf32>
    %20 = vector.broadcast %19 : vector<1x8x256xf32> to vector<2x8x256xf32>
    %21 = arith.addf %17, %20 : vector<2x8x256xf32>
    %c0_6 = arith.constant 0 : index
    %c0_7 = arith.constant 0 : index
    %22 = vector.load %arg3[%c0_6, %c0_7] : memref<8x256xf32, #tpu.memory_space<vmem>>, vector<8x256xf32>
    %23 = vector.shape_cast %22 : vector<8x256xf32> to vector<1x8x256xf32>
    %24 = vector.broadcast %23 : vector<1x8x256xf32> to vector<2x8x256xf32>
    %25 = arith.mulf %21, %24 : vector<2x8x256xf32>
    %c0_8 = arith.constant 0 : index
    %c0_9 = arith.constant 0 : index
    %c0_10 = arith.constant 0 : index
    %26 = vector.load %arg4[%c0_8, %c0_9, %c0_10] : memref<2x8x256xf32, #tpu.memory_space<vmem>>, vector<2x8x256xf32>
    tpu.vector_store %arg4[%c0_8, %c0_9, %c0_10], %25 {strides = array<i32>} : memref<2x8x256xf32, #tpu.memory_space<vmem>>, vector<2x8x256xf32>,
    return
  }
  func.func @transform_0(%arg0: i32) -> (i32, i32, i32) {
    %c0_i32 = arith.constant 0 : i32
    %c0_i32_0 = arith.constant 0 : i32
    %c0_i32_1 = arith.constant 0 : i32
    return %c0_i32, %c0_i32_0, %arg0 : i32, i32, i32
  }
  func.func @transform_1(%arg0: i32) -> (i32, i32) {
    %c0_i32 = arith.constant 0 : i32
    %c0_i32_0 = arith.constant 0 : i32
    return %c0_i32, %arg0 : i32, i32
  }
  func.func @transform_2(%arg0: i32) -> (i32, i32) {
    %c0_i32 = arith.constant 0 : i32
    %c0_i32_0 = arith.constant 0 : i32
    return %c0_i32, %arg0 : i32, i32
  }
  func.func @transform_3(%arg0: i32) -> (i32, i32, i32) {
    %c0_i32 = arith.constant 0 : i32
    %c0_i32_0 = arith.constant 0 : i32
    %c0_i32_1 = arith.constant 0 : i32
    return %c0_i32, %c0_i32_0, %arg0 : i32, i32, i32
  }
}

module attributes {stable_mosaic.version = 11 : i64} {
  func.func @_conv_mm_kernel(%arg0: i32, %arg1: memref<16x32xbf16, #tpu.memory_space<vmem>>, %arg2: memref<32x128xbf16, #tpu.memory_space<vmem>>, %arg3: memref<16x128xbf16, #tpu.memory_space<vmem>>) attributes {dimension_semantics = [#tpu.dimension_semantics<parallel>], iteration_bounds = array<i64: 1>, scalar_prefetch = 0 : i64, scratch_operands = 0 : i64, tpu.core_type = #tpu.core_type<tc>, window_params = [{pipeline_mode = #tpu.pipeline_mode<synchronous>, transform_indices = @transform_0, window_bounds = array<i64: 16, 32>}, {transform_indices = @transform_1, window_bounds = array<i64: 32, 128>}, {transform_indices = @transform_2, window_bounds = array<i64: 16, 128>}]} {
    %c0 = arith.constant 0 : index
    %c0_0 = arith.constant 0 : index
    %0 = vector.load %arg1[%c0, %c0_0] : memref<16x32xbf16, #tpu.memory_space<vmem>>, vector<16x32xbf16>
    %c0_1 = arith.constant 0 : index
    %c0_2 = arith.constant 0 : index
    %1 = vector.load %arg2[%c0_1, %c0_2] : memref<32x128xbf16, #tpu.memory_space<vmem>>, vector<32x128xbf16>
    %cst = arith.constant dense<0.000000e+00> : vector<16x128xf32>
    %2 = tpu.matmul %0, %1, %cst {dimension_numbers = #tpu.dot_dimension_numbers<[1], [0], [0], [1], [0, 0, 1, 1], [], []>} : vector<16x32xbf16>, vector<32x128xbf16>, vector<16x128xf32> -> vector<16x128xf32>
    %3 = arith.truncf %2 : vector<16x128xf32> to vector<16x128xbf16>
    %c0_3 = arith.constant 0 : index
    %c0_4 = arith.constant 0 : index
    %4 = vector.load %arg3[%c0_3, %c0_4] : memref<16x128xbf16, #tpu.memory_space<vmem>>, vector<16x128xbf16>
    tpu.vector_store %arg3[%c0_3, %c0_4], %3 {strides = array<i32>} : memref<16x128xbf16, #tpu.memory_space<vmem>>, vector<16x128xbf16>,
    return
  }
  func.func @transform_0(%arg0: i32) -> (i32, i32) {
    %c0_i32 = arith.constant 0 : i32
    %c0_i32_0 = arith.constant 0 : i32
    %c0_i32_1 = arith.constant 0 : i32
    return %c0_i32, %c0_i32_0 : i32, i32
  }
  func.func @transform_1(%arg0: i32) -> (i32, i32) {
    %c0_i32 = arith.constant 0 : i32
    %c0_i32_0 = arith.constant 0 : i32
    return %c0_i32, %arg0 : i32, i32
  }
  func.func @transform_2(%arg0: i32) -> (i32, i32) {
    %c0_i32 = arith.constant 0 : i32
    %c0_i32_0 = arith.constant 0 : i32
    return %c0_i32, %arg0 : i32, i32
  }
}

module attributes {stable_mosaic.version = 11 : i64} {
  func.func @_yolo_kernel(%arg0: i32, %arg1: memref<2x8x128xbf16, #tpu.memory_space<vmem>>, %arg2: memref<8x128xf32, #tpu.memory_space<vmem>>, %arg3: memref<8x128xf32, #tpu.memory_space<vmem>>, %arg4: memref<2x8x128xf32, #tpu.memory_space<vmem>>) attributes {dimension_semantics = [#tpu.dimension_semantics<parallel>], iteration_bounds = array<i64: 1>, scalar_prefetch = 0 : i64, scratch_operands = 0 : i64, tpu.core_type = #tpu.core_type<tc>, window_params = [{transform_indices = @transform_0, window_bounds = array<i64: 2, 8, 128>}, {transform_indices = @transform_1, window_bounds = array<i64: 8, 128>}, {transform_indices = @transform_2, window_bounds = array<i64: 8, 128>}, {transform_indices = @transform_3, window_bounds = array<i64: 2, 8, 128>}]} {
    %c0 = arith.constant 0 : index
    %c0_0 = arith.constant 0 : index
    %c0_1 = arith.constant 0 : index
    %0 = vector.load %arg1[%c0, %c0_0, %c0_1] : memref<2x8x128xbf16, #tpu.memory_space<vmem>>, vector<2x8x128xbf16>
    %1 = arith.extf %0 : vector<2x8x128xbf16> to vector<2x8x128xf32>
    %2 = tpu.iota {dimensions = array<i32: 1>} : vector<2x8x128xi32>
    %c2_i32 = arith.constant 2 : i32
    %3 = vector.broadcast %c2_i32 : i32 to vector<2x8x128xi32>
    %4 = arith.cmpi eq, %2, %3 : vector<2x8x128xi32>
    %c3_i32 = arith.constant 3 : i32
    %5 = vector.broadcast %c3_i32 : i32 to vector<2x8x128xi32>
    %6 = arith.cmpi eq, %2, %5 : vector<2x8x128xi32>
    %7 = arith.ori %4, %6 : vector<2x8x128xi1>
    %cst = arith.constant 0.000000e+00 : f32
    %8 = vector.broadcast %cst : f32 to vector<2x8x128xf32>
    %9 = arith.subf %8, %1 : vector<2x8x128xf32>
    %10 = math.exp %9 : vector<2x8x128xf32>
    %cst_2 = arith.constant 1.000000e+00 : f32
    %11 = vector.broadcast %cst_2 : f32 to vector<2x8x128xf32>
    %12 = arith.addf %11, %10 : vector<2x8x128xf32>
    %13 = tpu.reciprocal %12 {approx = true} : vector<2x8x128xf32> -> vector<2x8x128xf32>
    %cst_3 = arith.constant 0.000000e+00 : f32
    %14 = vector.broadcast %cst_3 : f32 to vector<2x8x128xf32>
    %15 = arith.select %7, %1, %14 : vector<2x8x128xi1>, vector<2x8x128xf32>
    %16 = math.exp %15 : vector<2x8x128xf32>
    %17 = arith.select %7, %16, %13 : vector<2x8x128xi1>, vector<2x8x128xf32>
    %c0_4 = arith.constant 0 : index
    %c0_5 = arith.constant 0 : index
    %18 = vector.load %arg2[%c0_4, %c0_5] : memref<8x128xf32, #tpu.memory_space<vmem>>, vector<8x128xf32>
    %19 = vector.shape_cast %18 : vector<8x128xf32> to vector<1x8x128xf32>
    %20 = vector.broadcast %19 : vector<1x8x128xf32> to vector<2x8x128xf32>
    %21 = arith.addf %17, %20 : vector<2x8x128xf32>
    %c0_6 = arith.constant 0 : index
    %c0_7 = arith.constant 0 : index
    %22 = vector.load %arg3[%c0_6, %c0_7] : memref<8x128xf32, #tpu.memory_space<vmem>>, vector<8x128xf32>
    %23 = vector.shape_cast %22 : vector<8x128xf32> to vector<1x8x128xf32>
    %24 = vector.broadcast %23 : vector<1x8x128xf32> to vector<2x8x128xf32>
    %25 = arith.mulf %21, %24 : vector<2x8x128xf32>
    %c0_8 = arith.constant 0 : index
    %c0_9 = arith.constant 0 : index
    %c0_10 = arith.constant 0 : index
    %26 = vector.load %arg4[%c0_8, %c0_9, %c0_10] : memref<2x8x128xf32, #tpu.memory_space<vmem>>, vector<2x8x128xf32>
    tpu.vector_store %arg4[%c0_8, %c0_9, %c0_10], %25 {strides = array<i32>} : memref<2x8x128xf32, #tpu.memory_space<vmem>>, vector<2x8x128xf32>,
    return
  }
  func.func @transform_0(%arg0: i32) -> (i32, i32, i32) {
    %c0_i32 = arith.constant 0 : i32
    %c0_i32_0 = arith.constant 0 : i32
    %c0_i32_1 = arith.constant 0 : i32
    return %c0_i32, %c0_i32_0, %arg0 : i32, i32, i32
  }
  func.func @transform_1(%arg0: i32) -> (i32, i32) {
    %c0_i32 = arith.constant 0 : i32
    %c0_i32_0 = arith.constant 0 : i32
    return %c0_i32, %arg0 : i32, i32
  }
  func.func @transform_2(%arg0: i32) -> (i32, i32) {
    %c0_i32 = arith.constant 0 : i32
    %c0_i32_0 = arith.constant 0 : i32
    return %c0_i32, %arg0 : i32, i32
  }
  func.func @transform_3(%arg0: i32) -> (i32, i32, i32) {
    %c0_i32 = arith.constant 0 : i32
    %c0_i32_0 = arith.constant 0 : i32
    %c0_i32_1 = arith.constant 0 : i32
    return %c0_i32, %c0_i32_0, %arg0 : i32, i32, i32
  }
}

</mosaic_0001>

<llo_original>
// kernel: _lambda_.9
$region0: #{_lambda_.9}
  #allocation0 [shape = 'u32[]', space=smem, size = 0x4, offset = 0x4, fixed_abs, tag = 'smem constant byte address 0x4 - core index']
  #allocation1 [shape = 'u32[144,128]{1,0:T(1,128)}', space=vmem, size = 0x12000, scoped, tag = 'internal scratch']
  %s0 = inlined_call_operand.vmem [shape: bf16[8,32], index: 0, kind: input, shape index: {}]
  %s1 = inlined_call_operand.vmem [shape: bf16[32,512], index: 1, kind: input, shape index: {}]
  %s2 = inlined_call_operand.vmem [shape: bf16[8,512], index: 2, kind: output, shape index: {}]
  %s3 = sld [smem:[#allocation0]]
  $region79: #{_lambda_.9} parent=0
    _
  %s5 = ssub.s32 1, %s3
  %s6 = scalar_select 0, %s5, %s3
  $region1: #{_lambda_.9} parent=0
    #allocation2 [shape = 'u8[32768]{0}', space=vmem, size = 0x8000, scoped, tag = 'input window, operand 1']
    loop: start=0, step=1, limit=4
    $region2: #{_lambda_.9} parent=1 // loop_pre_header
      _
    $region3: #{_lambda_.9} parent=1 // loop_header
      %s8 = sphi 0, %s12
      %p9 = scmp.ge.s32.totalorder %s8, 4
      %s16 = sphi 0, %s16
      %s18 = sphi 0, %s16
      %s19 = sphi 0, %s18
      %s33 = sphi 0, %s19
      %s39 = sphi 0, %s41
      %s42 = sphi 0, %s39
      %s43 = sphi 0, %s42
      %s59 = sphi 0, %s43
      %s65 = sphi 0, %s67
      %s68 = sphi 0, %s65
      %s69 = sphi 0, %s68
      %s85 = sphi 0, %s69
    $region4: #{_lambda_.9} parent=1 // loop_header_branch
      %11 = sbr.rel (%p9) target = $region8
    $region5: #{_lambda_.9} parent=1 // loop_body
      %s13 = ssub.s32 %s8, 1
      %s14 = ssub.s32 %s8, 2
      %s15 = sadd.s32 %s8, 1
      %s17 = sadd.s32 %s16, 1
      %p20 = scmp.eq.s32.totalorder %s8, 1
      %p21 = scmp.ne.s32.totalorder %s16, %s18
      %p22 = scmp.eq.s32.totalorder %s8, 0
      %p23 = por %p21, %p22
      %p24 = scmp.ne.s32.totalorder %s16, %s18
      %p25 = scmp.eq.s32.totalorder %s13, 1
      %p26 = por %p24, %p25
      %p27 = scmp.ne.s32.totalorder %s18, %s19
      %p28 = scmp.eq.s32.totalorder %s13, 0
      %p29 = por %p27, %p28
      %p30 = scmp.ne.s32.totalorder %s18, %s19
      %p31 = scmp.eq.s32.totalorder %s14, 1
      %p32 = por %p30, %p31
      %p34 = scmp.ne.s32.totalorder %s19, %s33
      %p35 = scmp.eq.s32.totalorder %s14, 0
      %p36 = por %p34, %p35
      %s37 = ssub.s32 %s8, %s15
      %p38 = scmp.eq.s32.totalorder %s37, 0
      %s40 = sadd.s32 %s39, 1
      %s41 = scalar_select %p38, %s39, %s40
      %p44 = pneg %p38
      %p45 = scmp.eq.s32.totalorder %s8, 1
      %p46 = por %p44, %p45
      %p47 = scmp.ne.s32.totalorder %s39, %s42
      %p48 = scmp.eq.s32.totalorder %s8, 0
      %p49 = por %p47, %p48
      %p50 = scmp.ne.s32.totalorder %s39, %s42
      %p51 = scmp.eq.s32.totalorder %s13, 1
      %p52 = por %p50, %p51
      %p53 = scmp.ne.s32.totalorder %s42, %s43
      %p54 = scmp.eq.s32.totalorder %s13, 0
      %p55 = por %p53, %p54
      %p56 = scmp.ne.s32.totalorder %s42, %s43
      %p57 = scmp.eq.s32.totalorder %s14, 1
      %p58 = por %p56, %p57
      %p60 = scmp.ne.s32.totalorder %s43, %s59
      %p61 = scmp.eq.s32.totalorder %s14, 0
      %p62 = por %p60, %p61
      %s63 = ssub.s32 %s8, %s15
      %p64 = scmp.eq.s32.totalorder %s63, 0
      %s66 = sadd.s32 %s65, 1
      %s67 = scalar_select %p64, %s65, %s66
      %p70 = pneg %p64
      %p71 = scmp.eq.s32.totalorder %s8, 1
      %p72 = por %p70, %p71
      %p73 = scmp.ne.s32.totalorder %s65, %s68
      %p74 = scmp.eq.s32.totalorder %s8, 0
      %p75 = por %p73, %p74
      %p76 = scmp.ne.s32.totalorder %s65, %s68
      %p77 = scmp.eq.s32.totalorder %s13, 1
      %p78 = por %p76, %p77
      %p79 = scmp.ne.s32.totalorder %s68, %s69
      %p80 = scmp.eq.s32.totalorder %s13, 0
      %p81 = por %p79, %p80
      %p82 = scmp.ne.s32.totalorder %s68, %s69
      %p83 = scmp.eq.s32.totalorder %s14, 1
      %p84 = por %p82, %p83
      %p86 = scmp.ne.s32.totalorder %s69, %s85
      %p87 = scmp.eq.s32.totalorder %s14, 0
      %p88 = por %p86, %p87
      %p89 = scmp.le.s32.totalorder 1, %s8
      %p90 = scmp.lt.s32.totalorder %s8, 3
      %p91 = pnand %p89, %p90
      %p92 = pneg %p91
      // Predicated region
      $region9: #{_lambda_.9} parent=5 // pred_check
        _
      $region10: #{_lambda_.9} parent=5 // pred_check_branch
        %94 = sbr.rel (%p91) target = $region12
      $region11: #{_lambda_.9} parent=5 // pred_region
        %s95 = ssub.s32 %s8, 1
        // Predicated region
        $region13: #{_lambda_.9} parent=11 // pred_check
          %p96 = pneg %p29
        $region14: #{_lambda_.9} parent=11 // pred_check_branch
          %98 = sbr.rel (%p96) target = $region16
        $region15: #{_lambda_.9} parent=11 // pred_region
          _
        $region16: #{_lambda_.9} parent=11 // pred_fallthru
          _
      $region12: #{_lambda_.9} parent=5 // pred_fallthru
        _
      %p99 = scmp.lt.s32.totalorder %s8, 2
      // Predicated region
      $region17: #{_lambda_.9} parent=5 // pred_check
        %p100 = pneg %p99
      $region18: #{_lambda_.9} parent=5 // pred_check_branch
        %102 = sbr.rel (%p100) target = $region20
      $region19: #{_lambda_.9} parent=5 // pred_region
        // Predicated region
        $region21: #{_lambda_.9} parent=19 // pred_check
          %p103 = pneg %p49
        $region22: #{_lambda_.9} parent=19 // pred_check_branch
          %105 = sbr.rel (%p103) target = $region24
        $region23: #{_lambda_.9} parent=19 // pred_region
          %s106 = sand.u32 %s39, 1
          %s107 = sand.u32 %s39, 1
          %s108 = smul.addr %s107, 32
          %s109 = scalar_lea.vmem [#allocation2], %s108
          %s110 = smul.u32 2, %s8
          %s111 = smul.addr %s110, 4
          %s112 = scalar_lea.vmem %s1, %s111
          // Predicated region
          $region25: #{_lambda_.9} parent=23 // pred_check
            _
          $region26: #{_lambda_.9} parent=23 // pred_check_branch
            %114 = sbr.rel (0) target = $region28
          $region27: #{_lambda_.9} parent=23 // pred_region
            // Predicated region
            $region29: #{_lambda_.9} parent=27 // pred_check
              _
            $region30: #{_lambda_.9} parent=27 // pred_check_branch
              %116 = sbr.rel (0) target = $region32
            $region31: #{_lambda_.9} parent=27 // pred_region
              // Predicated region
              $region44: #{_lambda_.9} parent=31 // pred_check
                _
              $region45: #{_lambda_.9} parent=31 // pred_check_branch
                %138 = sbr.rel (0) target = $region47
              $region46: #{_lambda_.9} parent=31 // pred_region
                loop: start=0, step=1, limit=1
                $region48: #{_lambda_.9} parent=46 // loop_pre_header
                  _
                $region49: #{_lambda_.9} parent=46 // loop_header
                  %s140 = sphi 0, %s144
                  %p141 = scmp.ge.s32.totalorder %s140, 1
                  %s145 = sphi %s112, %s112
                  %s146 = sphi %s109, %s109
                $region50: #{_lambda_.9} parent=46 // loop_header_branch
                  %143 = sbr.rel (%p141) target = $region54
                $region51: #{_lambda_.9} parent=46 // loop_body
                  %v147 = vld [vmem:[%s145] sm:$0xff]
                  %148 = vst [vmem:[%s146] sm:$0xff] %v147
                  %v149 = vld [vmem:[%s145 + $0x10] sm:$0xff]
                  %150 = vst [vmem:[%s146 + $0x8] sm:$0xff] %v149
                  %v151 = vld [vmem:[%s145 + $0x20] sm:$0xff]
                  %152 = vst [vmem:[%s146 + $0x10] sm:$0xff] %v151
                  %v153 = vld [vmem:[%s145 + $0x30] sm:$0xff]
                  %154 = vst [vmem:[%s146 + $0x18] sm:$0xff] %v153
                $region52: #{_lambda_.9} parent=46 // loop_footer
                  %s144 = sadd.s32 1, %s140
                $region53: #{_lambda_.9} parent=46 // loop_footer_branch
                  %139 = sbr.rel target = $region49
                $region54: #{_lambda_.9} parent=46 // loop_exit
                  _
              $region47: #{_lambda_.9} parent=31 // pred_fallthru
                _
              // Predicated region
              $region55: #{_lambda_.9} parent=31 // pred_check
                _
              $region56: #{_lambda_.9} parent=31 // pred_check_branch
                %156 = sbr.rel target = $region58
              $region57: #{_lambda_.9} parent=31 // pred_region
                _
              $region58: #{_lambda_.9} parent=31 // pred_fallthru
                _
            $region32: #{_lambda_.9} parent=27 // pred_fallthru
              _
            // Predicated region
            $region33: #{_lambda_.9} parent=27 // pred_check
              _
            $region34: #{_lambda_.9} parent=27 // pred_check_branch
              %118 = sbr.rel target = $region36
            $region35: #{_lambda_.9} parent=27 // pred_region
              %s120 = ssub.s32 256, 1
              loop: start=0, step=1, limit=1
              $region37: #{_lambda_.9} parent=35 // loop_pre_header
                _
              $region38: #{_lambda_.9} parent=35 // loop_header
                %s122 = sphi 0, %s126
                %p123 = scmp.ge.s32.totalorder %s122, 1
                %s127 = sphi %s112, %s112
                %s128 = sphi %s109, %s109
              $region39: #{_lambda_.9} parent=35 // loop_header_branch
                %125 = sbr.rel (%p123) target = $region43
              $region40: #{_lambda_.9} parent=35 // loop_body
                %v129 = vld [vmem:[%s127] sm:%s120]
                %130 = vst [vmem:[%s128] sm:%s120] %v129
                %v131 = vld [vmem:[%s127 + $0x10] sm:%s120]
                %132 = vst [vmem:[%s128 + $0x8] sm:%s120] %v131
                %v133 = vld [vmem:[%s127 + $0x20] sm:%s120]
                %134 = vst [vmem:[%s128 + $0x10] sm:%s120] %v133
                %v135 = vld [vmem:[%s127 + $0x30] sm:%s120]
                %136 = vst [vmem:[%s128 + $0x18] sm:%s120] %v135
              $region41: #{_lambda_.9} parent=35 // loop_footer
                %s126 = sadd.s32 1, %s122
              $region42: #{_lambda_.9} parent=35 // loop_footer_branch
                %121 = sbr.rel target = $region38
              $region43: #{_lambda_.9} parent=35 // loop_exit
                _
            $region36: #{_lambda_.9} parent=27 // pred_fallthru
              _
          $region28: #{_lambda_.9} parent=23 // pred_fallthru
            _
          %157 = vnop
        $region24: #{_lambda_.9} parent=19 // pred_fallthru
          _
      $region20: #{_lambda_.9} parent=5 // pred_fallthru
        _
      %p158 = scmp.le.s32.totalorder 1, %s8
      %p159 = scmp.lt.s32.totalorder %s8, 3
      %p160 = pnand %p158, %p159
      %p161 = pneg %p160
      // Predicated region
      $region59: #{_lambda_.9} parent=5 // pred_check
        _
      $region60: #{_lambda_.9} parent=5 // pred_check_branch
        %163 = sbr.rel (%p160) target = $region62
      $region61: #{_lambda_.9} parent=5 // pred_region
        %s164 = ssub.s32 %s8, 1
        %s165 = sand.u32 %s42, 1
        %s166 = sand.u32 %s42, 1
        %s167 = smul.addr %s166, 32
        %s168 = scalar_lea.vmem [#allocation2], %s167
        // Predicated region
        $region63: #{_lambda_.9} parent=61 // pred_check
          %p169 = pneg %p55
        $region64: #{_lambda_.9} parent=61 // pred_check_branch
          %171 = sbr.rel (%p169) target = $region66
        $region65: #{_lambda_.9} parent=61 // pred_region
          _
        $region66: #{_lambda_.9} parent=61 // pred_fallthru
          _
        %p172 = pneg %p29
        %p173 = pneg %p26
        %s174 = sand.u32 %s42, 1
        %s175 = sand.u32 %s42, 1
        %s176 = smul.addr %s175, 32
        %s177 = scalar_lea.vmem [#allocation2], %s176
        %p178 = pneg %p55
        %p179 = pneg %p52
        %p180 = pneg %p81
        %p181 = pneg %p78
        %s182 = smul.u32 2, %s13
        %p183 = scmp.lt.s32.totalorder %s182, 3
        %s184 = scalar_select %p183, %s182, 3
        %s185 = smul.addr %s184, 4
        %s186 = scalar_lea.vmem %s2, %s185
        %s187 = smul.u32 2, %s13
        %s188 = smul.u32 2, %s13
        %p189 = scmp.lt.s32.totalorder %s188, 3
        %s190 = scalar_select %p189, %s188, 3
        %s191 = smul.addr %s190, 4
        %s192 = scalar_lea.vmem %s2, %s191
        %s193 = smul.u32 2, %s13
        %v195 = vld [vmem:[%s0] sm:$0xf]
        %v196 = vld [vmem:[%s168] sm:$0xff]
        %v197 = vld [vmem:[%s168 + $0x8] sm:$0xff]
        %v198 = vld [vmem:[%s168 + $0x10] sm:$0xff]
        %v199 = vld [vmem:[%s168 + $0x18] sm:$0xff]
        %v204 = vunpack.c.l.b16 %v196
        %v205 = vunpack.c.h.b16 %v196
        %v206 = vunpack.c.l.b16 %v197
        %v207 = vunpack.c.h.b16 %v197
        %v208 = vunpack.c.l.b16 %v198
        %v209 = vunpack.c.h.b16 %v198
        %v210 = vunpack.c.l.b16 %v199
        %v211 = vunpack.c.h.b16 %v199
        %v212 = vpack.c.b16 %v206, %v204
        %v213 = vpack.c.b16 %v207, %v205
        %v214 = vpack.c.b16 %v210, %v208
        %v215 = vpack.c.b16 %v211, %v209
        %vm220 = vcmask 261120
        %v222 = vsel %vm220, %v195, 0
        %224 = vmatprep.subr.bf16.mxu0 0
        %225 = vmatpush1.bf16.msra.mxu0 0
        %226 = vmatprep.subr.bf16.mxu0 0
        %227 = vmatpush1.bf16.msra.mxu0 0
        %228 = vmatprep.subr.bf16.mxu0 0
        %229 = vmatpush1.bf16.msra.mxu0 0
        %230 = vmatprep.subr.bf16.mxu0 0
        %231 = vmatpush1.bf16.msra.mxu0 0
        %232 = vmatprep.subr.bf16.mxu0 0
        %233 = vmatpush1.bf16.msra.mxu0 0
        %234 = vmatprep.subr.bf16.mxu0 0
        %235 = vmatpush1.bf16.msra.mxu0 0
        %236 = vmatprep.subr.bf16.mxu0 %v215
        %237 = vmatpush1.bf16.msra.mxu0 %v214
        %238 = vmatprep.subr.bf16.mxu0 %v213
        %239 = vmatpush1.bf16.msra.mxu0 %v212
        %240 = vmatprep.subr.bf16.mxu0 0
        %241 = vmatpush2.bf16.msra.mxu0 0
        %242 = vmatprep.subr.bf16.mxu0 0
        %243 = vmatpush2.bf16.msra.mxu0 0
        %244 = vmatprep.subr.bf16.mxu0 0
        %245 = vmatpush2.bf16.msra.mxu0 0
        %246 = vmatprep.subr.bf16.mxu0 0
        %247 = vmatpush2.bf16.msra.mxu0 0
        %248 = vmatprep.subr.bf16.mxu0 0
        %249 = vmatpush2.bf16.msra.mxu0 0
        %250 = vmatprep.subr.bf16.mxu0 0
        %251 = vmatpush2.bf16.msra.mxu0 0
        %252 = vmatprep.subr.bf16.mxu0 0
        %253 = vmatpush2.bf16.msra.mxu0 0
        %254 = vmatprep.subr.bf16.mxu0 0
        %255 = vmatpush2.bf16.msra.mxu0 0
        %256 = vmatprep.mubr.bf16.mxu0 0
        %257 = vmatmul.mubr.bf16.gmra.mxu0 %v222
        %v258 = vpop.f32.mrf.mxu0
        %v259 = vadd.f32 0.0, %v258
        %v260 = vpop.f32.mrf.mxu0
        %v261 = vadd.f32 0.0, %v260
        %v262 = vpop.f32.mrf.mxu0
        %v263 = vpop.f32.mrf.mxu0
        %264 = vdwg.mxu0
        %vm265 = vcmp.gt.f32.partialorder %v259, 0.0
        %vm266 = vcmp.gt.f32.partialorder %v261, 0.0
        %v267 = vmul.f32 %v259, 0.1
        %v268 = vmul.f32 %v261, 0.1
        %v269 = vsel %vm265, %v259, %v267
        %v270 = vsel %vm266, %v261, %v268
        %v271 = vpack.c.bf16 %v269, %v269
        %v272 = vpack.c.bf16 %v270, %v270
        %v275 = vunpack.c.l.b16 %v271
        %v276 = vunpack.c.l.b16 %v272
        %v277 = vpack.c.b16 %v276, %v275
        %279 = vst [vmem:[%s192] sm:$0xff] %v277
        %s280 = smul.u32 2, %s13
        %p281 = scmp.lt.s32.totalorder %s280, 3
        %s282 = scalar_select %p281, %s280, 3
        %s283 = smul.addr %s282, 4
        %s284 = scalar_lea.vmem %s2, %s283
        // Predicated region
        $region67: #{_lambda_.9} parent=61 // pred_check
          %p285 = pneg %p78
        $region68: #{_lambda_.9} parent=61 // pred_check_branch
          %287 = sbr.rel (%p285) target = $region70
        $region69: #{_lambda_.9} parent=61 // pred_region
          %s288 = smul.u32 2, %s13
        $region70: #{_lambda_.9} parent=61 // pred_fallthru
          _
      $region62: #{_lambda_.9} parent=5 // pred_fallthru
        _
      %p289 = scmp.le.s32.totalorder 2, %s8
      // Predicated region
      $region71: #{_lambda_.9} parent=5 // pred_check
        %p290 = pneg %p289
      $region72: #{_lambda_.9} parent=5 // pred_check_branch
        %292 = sbr.rel (%p290) target = $region74
      $region73: #{_lambda_.9} parent=5 // pred_region
        %s293 = ssub.s32 %s8, 2
        // Predicated region
        $region75: #{_lambda_.9} parent=73 // pred_check
          %p294 = pneg %p84
        $region76: #{_lambda_.9} parent=73 // pred_check_branch
          %296 = sbr.rel (%p294) target = $region78
        $region77: #{_lambda_.9} parent=73 // pred_region
          %s297 = smul.u32 2, %s14
          %p298 = scmp.lt.s32.totalorder %s297, 3
          %s299 = scalar_select %p298, %s297, 3
          %s300 = smul.addr %s299, 4
          %s301 = scalar_lea.vmem %s2, %s300
        $region78: #{_lambda_.9} parent=73 // pred_fallthru
          _
      $region74: #{_lambda_.9} parent=5 // pred_fallthru
        _
    $region6: #{_lambda_.9} parent=1 // loop_footer
      %s12 = sadd.s32 1, %s8
    $region7: #{_lambda_.9} parent=1 // loop_footer_branch
      %7 = sbr.rel target = $region3
    $region8: #{_lambda_.9} parent=1 // loop_exit
      _

// kernel: _lambda_.10
$region0: #{_lambda_.10}
  #allocation0 [shape = 'u32[]', space=smem, size = 0x4, offset = 0x4, fixed_abs, tag = 'smem constant byte address 0x4 - core index']
  #allocation1 [shape = 'u32[144,128]{1,0:T(1,128)}', space=vmem, size = 0x12000, scoped, tag = 'internal scratch']
  %s0 = inlined_call_operand.vmem [shape: bf16[16,128], index: 0, kind: input, shape index: {}]
  %s1 = inlined_call_operand.vmem [shape: bf16[128,128], index: 1, kind: input, shape index: {}]
  %s2 = inlined_call_operand.vmem [shape: bf16[16,128], index: 2, kind: output, shape index: {}]
  %s3 = sld [smem:[#allocation0]]
  $region18: #{_lambda_.10} parent=0
    _
  %s5 = ssub.s32 1, %s3
  %s6 = scalar_select 0, %s5, %s3
  // Predicated region
  $region2: #{_lambda_.10} parent=0 // pred_check
    _
  $region3: #{_lambda_.10} parent=0 // pred_check_branch
    %8 = sbr.rel (0) target = $region5
  $region4: #{_lambda_.10} parent=0 // pred_region
    _
  $region5: #{_lambda_.10} parent=0 // pred_fallthru
    _
  // Predicated region
  $region6: #{_lambda_.10} parent=0 // pred_check
    _
  $region7: #{_lambda_.10} parent=0 // pred_check_branch
    %10 = sbr.rel (0) target = $region9
  $region8: #{_lambda_.10} parent=0 // pred_region
    _
  $region9: #{_lambda_.10} parent=0 // pred_fallthru
    _
  %v12 = vld [vmem:[%s0] sm:$0xf]
  %v13 = vld [vmem:[%s0 + $0x4] sm:$0xf]
  %v14 = vld [vmem:[%s1] sm:$0xf]
  %v15 = vld [vmem:[%s1 + $0x4] sm:$0xf]
  %v16 = vld [vmem:[%s1 + $0x8] sm:$0xf]
  %v17 = vld [vmem:[%s1 + $0xc] sm:$0xf]
  %v18 = vld [vmem:[%s1 + $0x10] sm:$0xf]
  %v19 = vld [vmem:[%s1 + $0x14] sm:$0xf]
  %v20 = vld [vmem:[%s1 + $0x18] sm:$0xf]
  %v21 = vld [vmem:[%s1 + $0x1c] sm:$0xf]
  %v22 = vld [vmem:[%s1 + $0x20] sm:$0xf]
  %v23 = vld [vmem:[%s1 + $0x24] sm:$0xf]
  %v24 = vld [vmem:[%s1 + $0x28] sm:$0xf]
  %v25 = vld [vmem:[%s1 + $0x2c] sm:$0xf]
  %v26 = vld [vmem:[%s1 + $0x30] sm:$0xf]
  %v27 = vld [vmem:[%s1 + $0x34] sm:$0xf]
  %v28 = vld [vmem:[%s1 + $0x38] sm:$0xf]
  %v29 = vld [vmem:[%s1 + $0x3c] sm:$0xf]
  %v32 = vunpack.c.l.b16 %v12
  %v33 = vunpack.c.l.b16 %v13
  %v34 = vpack.c.b16 %v33, %v32
  %v52 = vunpack.c.l.b16 %v14
  %v53 = vunpack.c.l.b16 %v15
  %v54 = vunpack.c.l.b16 %v16
  %v55 = vunpack.c.l.b16 %v17
  %v56 = vunpack.c.l.b16 %v18
  %v57 = vunpack.c.l.b16 %v19
  %v58 = vunpack.c.l.b16 %v20
  %v59 = vunpack.c.l.b16 %v21
  %v60 = vunpack.c.l.b16 %v22
  %v61 = vunpack.c.l.b16 %v23
  %v62 = vunpack.c.l.b16 %v24
  %v63 = vunpack.c.l.b16 %v25
  %v64 = vunpack.c.l.b16 %v26
  %v65 = vunpack.c.l.b16 %v27
  %v66 = vunpack.c.l.b16 %v28
  %v67 = vunpack.c.l.b16 %v29
  %v68 = vpack.c.b16 %v53, %v52
  %v69 = vpack.c.b16 %v55, %v54
  %v70 = vpack.c.b16 %v57, %v56
  %v71 = vpack.c.b16 %v59, %v58
  %v72 = vpack.c.b16 %v61, %v60
  %v73 = vpack.c.b16 %v63, %v62
  %v74 = vpack.c.b16 %v65, %v64
  %v75 = vpack.c.b16 %v67, %v66
  %84 = vmatprep.subr.bf16.mxu0 0
  %85 = vmatpush1.bf16.msra.mxu0 %v75
  %86 = vmatprep.subr.bf16.mxu0 0
  %87 = vmatpush1.bf16.msra.mxu0 %v74
  %88 = vmatprep.subr.bf16.mxu0 0
  %89 = vmatpush1.bf16.msra.mxu0 %v73
  %90 = vmatprep.subr.bf16.mxu0 0
  %91 = vmatpush1.bf16.msra.mxu0 %v72
  %92 = vmatprep.subr.bf16.mxu0 0
  %93 = vmatpush1.bf16.msra.mxu0 %v71
  %94 = vmatprep.subr.bf16.mxu0 0
  %95 = vmatpush1.bf16.msra.mxu0 %v70
  %96 = vmatprep.subr.bf16.mxu0 0
  %97 = vmatpush1.bf16.msra.mxu0 %v69
  %98 = vmatprep.subr.bf16.mxu0 0
  %99 = vmatpush1.bf16.msra.mxu0 %v68
  %100 = vmatprep.subr.bf16.mxu0 0
  %101 = vmatpush2.bf16.msra.mxu0 0
  %102 = vmatprep.subr.bf16.mxu0 0
  %103 = vmatpush2.bf16.msra.mxu0 0
  %104 = vmatprep.subr.bf16.mxu0 0
  %105 = vmatpush2.bf16.msra.mxu0 0
  %106 = vmatprep.subr.bf16.mxu0 0
  %107 = vmatpush2.bf16.msra.mxu0 0
  %108 = vmatprep.subr.bf16.mxu0 0
  %109 = vmatpush2.bf16.msra.mxu0 0
  %110 = vmatprep.subr.bf16.mxu0 0
  %111 = vmatpush2.bf16.msra.mxu0 0
  %112 = vmatprep.subr.bf16.mxu0 0
  %113 = vmatpush2.bf16.msra.mxu0 0
  %114 = vmatprep.subr.bf16.mxu0 0
  %115 = vmatpush2.bf16.msra.mxu0 0
  %116 = vmatprep.mubr.bf16.mxu0 0
  %117 = vmatmul.mubr.bf16.gmra.mxu0 %v34
  %v118 = vpop.f32.mrf.mxu0
  %v119 = vadd.f32 0.0, %v118
  %v120 = vpop.f32.mrf.mxu0
  %v121 = vpop.f32.mrf.mxu0
  %v122 = vadd.f32 0.0, %v121
  %v123 = vpop.f32.mrf.mxu0
  %124 = vdwg.mxu0
  %vm125 = vcmp.gt.f32.partialorder %v119, 0.0
  %vm126 = vcmp.gt.f32.partialorder %v122, 0.0
  %v127 = vmul.f32 %v119, 0.1
  %v128 = vmul.f32 %v122, 0.1
  %v129 = vsel %vm125, %v119, %v127
  %v130 = vsel %vm126, %v122, %v128
  %v131 = vpack.c.bf16 %v130, %v129
  %v133 = vunpack.c.l.b16 %v131
  %v134 = vunpack.c.h.b16 %v131
  %v135 = vpack.c.b16 %v133, %v133
  %v136 = vpack.c.b16 %v134, %v134
  %139 = vst [vmem:[%s2] sm:$0xf] %v135
  %140 = vst [vmem:[%s2 + $0x4] sm:$0xf] %v136
  // Predicated region
  $region10: #{_lambda_.10} parent=0 // pred_check
    _
  $region11: #{_lambda_.10} parent=0 // pred_check_branch
    %142 = sbr.rel (0) target = $region13
  $region12: #{_lambda_.10} parent=0 // pred_region
    _
  $region13: #{_lambda_.10} parent=0 // pred_fallthru
    _
  // Predicated region
  $region14: #{_lambda_.10} parent=0 // pred_check
    _
  $region15: #{_lambda_.10} parent=0 // pred_check_branch
    %144 = sbr.rel (0) target = $region17
  $region16: #{_lambda_.10} parent=0 // pred_region
    _
  $region17: #{_lambda_.10} parent=0 // pred_fallthru
    _

// kernel: _lambda_.11
$region0: #{_lambda_.11}
  #allocation0 [shape = 'u32[]', space=smem, size = 0x4, offset = 0x4, fixed_abs, tag = 'smem constant byte address 0x4 - core index']
  #allocation1 [shape = 'u32[144,128]{1,0:T(1,128)}', space=vmem, size = 0x12000, scoped, tag = 'internal scratch']
  %s0 = inlined_call_operand.vmem [shape: bf16[16,32], index: 0, kind: input, shape index: {}]
  %s1 = inlined_call_operand.vmem [shape: bf16[32,128], index: 1, kind: input, shape index: {}]
  %s2 = inlined_call_operand.vmem [shape: bf16[16,128], index: 2, kind: output, shape index: {}]
  %s3 = sld [smem:[#allocation0]]
  $region18: #{_lambda_.11} parent=0
    _
  %s5 = ssub.s32 1, %s3
  %s6 = scalar_select 0, %s5, %s3
  // Predicated region
  $region2: #{_lambda_.11} parent=0 // pred_check
    _
  $region3: #{_lambda_.11} parent=0 // pred_check_branch
    %8 = sbr.rel (0) target = $region5
  $region4: #{_lambda_.11} parent=0 // pred_region
    _
  $region5: #{_lambda_.11} parent=0 // pred_fallthru
    _
  // Predicated region
  $region6: #{_lambda_.11} parent=0 // pred_check
    _
  $region7: #{_lambda_.11} parent=0 // pred_check_branch
    %10 = sbr.rel (0) target = $region9
  $region8: #{_lambda_.11} parent=0 // pred_region
    _
  $region9: #{_lambda_.11} parent=0 // pred_fallthru
    _
  %v12 = vld [vmem:[%s0] sm:$0xf]
  %v13 = vld [vmem:[%s0 + $0x4] sm:$0xf]
  %v14 = vld [vmem:[%s1] sm:$0xf]
  %v15 = vld [vmem:[%s1 + $0x4] sm:$0xf]
  %v16 = vld [vmem:[%s1 + $0x8] sm:$0xf]
  %v17 = vld [vmem:[%s1 + $0xc] sm:$0xf]
  %v20 = vunpack.c.l.b16 %v12
  %v21 = vunpack.c.l.b16 %v13
  %v22 = vpack.c.b16 %v21, %v20
  %v27 = vunpack.c.l.b16 %v14
  %v28 = vunpack.c.l.b16 %v15
  %v29 = vunpack.c.l.b16 %v16
  %v30 = vunpack.c.l.b16 %v17
  %v31 = vpack.c.b16 %v28, %v27
  %v32 = vpack.c.b16 %v30, %v29
  %vm35 = vcmask 261120
  %v37 = vsel %vm35, %v22, 0
  %39 = vmatprep.subr.bf16.mxu0 0
  %40 = vmatpush1.bf16.msra.mxu0 0
  %41 = vmatprep.subr.bf16.mxu0 0
  %42 = vmatpush1.bf16.msra.mxu0 0
  %43 = vmatprep.subr.bf16.mxu0 0
  %44 = vmatpush1.bf16.msra.mxu0 0
  %45 = vmatprep.subr.bf16.mxu0 0
  %46 = vmatpush1.bf16.msra.mxu0 0
  %47 = vmatprep.subr.bf16.mxu0 0
  %48 = vmatpush1.bf16.msra.mxu0 0
  %49 = vmatprep.subr.bf16.mxu0 0
  %50 = vmatpush1.bf16.msra.mxu0 0
  %51 = vmatprep.subr.bf16.mxu0 0
  %52 = vmatpush1.bf16.msra.mxu0 %v32
  %53 = vmatprep.subr.bf16.mxu0 0
  %54 = vmatpush1.bf16.msra.mxu0 %v31
  %55 = vmatprep.subr.bf16.mxu0 0
  %56 = vmatpush2.bf16.msra.mxu0 0
  %57 = vmatprep.subr.bf16.mxu0 0
  %58 = vmatpush2.bf16.msra.mxu0 0
  %59 = vmatprep.subr.bf16.mxu0 0
  %60 = vmatpush2.bf16.msra.mxu0 0
  %61 = vmatprep.subr.bf16.mxu0 0
  %62 = vmatpush2.bf16.msra.mxu0 0
  %63 = vmatprep.subr.bf16.mxu0 0
  %64 = vmatpush2.bf16.msra.mxu0 0
  %65 = vmatprep.subr.bf16.mxu0 0
  %66 = vmatpush2.bf16.msra.mxu0 0
  %67 = vmatprep.subr.bf16.mxu0 0
  %68 = vmatpush2.bf16.msra.mxu0 0
  %69 = vmatprep.subr.bf16.mxu0 0
  %70 = vmatpush2.bf16.msra.mxu0 0
  %71 = vmatprep.mubr.bf16.mxu0 0
  %72 = vmatmul.mubr.bf16.gmra.mxu0 %v37
  %v73 = vpop.f32.mrf.mxu0
  %v74 = vadd.f32 0.0, %v73
  %v75 = vpop.f32.mrf.mxu0
  %v76 = vpop.f32.mrf.mxu0
  %v77 = vadd.f32 0.0, %v76
  %v78 = vpop.f32.mrf.mxu0
  %79 = vdwg.mxu0
  %vm80 = vcmp.gt.f32.partialorder %v74, 0.0
  %vm81 = vcmp.gt.f32.partialorder %v77, 0.0
  %v82 = vmul.f32 %v74, 0.1
  %v83 = vmul.f32 %v77, 0.1
  %v84 = vsel %vm80, %v74, %v82
  %v85 = vsel %vm81, %v77, %v83
  %v86 = vpack.c.bf16 %v85, %v84
  %v88 = vunpack.c.l.b16 %v86
  %v89 = vunpack.c.h.b16 %v86
  %v90 = vpack.c.b16 %v88, %v88
  %v91 = vpack.c.b16 %v89, %v89
  %94 = vst [vmem:[%s2] sm:$0xf] %v90
  %95 = vst [vmem:[%s2 + $0x4] sm:$0xf] %v91
  // Predicated region
  $region10: #{_lambda_.11} parent=0 // pred_check
    _
  $region11: #{_lambda_.11} parent=0 // pred_check_branch
    %97 = sbr.rel (0) target = $region13
  $region12: #{_lambda_.11} parent=0 // pred_region
    _
  $region13: #{_lambda_.11} parent=0 // pred_fallthru
    _
  // Predicated region
  $region14: #{_lambda_.11} parent=0 // pred_check
    _
  $region15: #{_lambda_.11} parent=0 // pred_check_branch
    %99 = sbr.rel (0) target = $region17
  $region16: #{_lambda_.11} parent=0 // pred_region
    _
  $region17: #{_lambda_.11} parent=0 // pred_fallthru
    _

// kernel: _lambda_.12
$region0: #{_lambda_.12}
  #allocation0 [shape = 'u32[]', space=smem, size = 0x4, offset = 0x4, fixed_abs, tag = 'smem constant byte address 0x4 - core index']
  #allocation1 [shape = 'u32[144,128]{1,0:T(1,128)}', space=vmem, size = 0x12000, scoped, tag = 'internal scratch']
  %s0 = inlined_call_operand.vmem [shape: bf16[16,256], index: 0, kind: input, shape index: {}]
  %s1 = inlined_call_operand.vmem [shape: bf16[256,128], index: 1, kind: input, shape index: {}]
  %s2 = inlined_call_operand.vmem [shape: bf16[16,128], index: 2, kind: input, shape index: {}]
  %s3 = inlined_call_operand.vmem [shape: bf16[16,128], index: 3, kind: output, shape index: {}]
  %s4 = sld [smem:[#allocation0]]
  $region22: #{_lambda_.12} parent=0
    _
  %s6 = ssub.s32 1, %s4
  %s7 = scalar_select 0, %s6, %s4
  // Predicated region
  $region2: #{_lambda_.12} parent=0 // pred_check
    _
  $region3: #{_lambda_.12} parent=0 // pred_check_branch
    %9 = sbr.rel (0) target = $region5
  $region4: #{_lambda_.12} parent=0 // pred_region
    _
  $region5: #{_lambda_.12} parent=0 // pred_fallthru
    _
  // Predicated region
  $region6: #{_lambda_.12} parent=0 // pred_check
    _
  $region7: #{_lambda_.12} parent=0 // pred_check_branch
    %11 = sbr.rel (0) target = $region9
  $region8: #{_lambda_.12} parent=0 // pred_region
    _
  $region9: #{_lambda_.12} parent=0 // pred_fallthru
    _
  // Predicated region
  $region10: #{_lambda_.12} parent=0 // pred_check
    _
  $region11: #{_lambda_.12} parent=0 // pred_check_branch
    %13 = sbr.rel (0) target = $region13
  $region12: #{_lambda_.12} parent=0 // pred_region
    _
  $region13: #{_lambda_.12} parent=0 // pred_fallthru
    _
  %v15 = vld [vmem:[%s0] sm:$0xff]
  %v16 = vld [vmem:[%s0 + $0x8] sm:$0xff]
  %v17 = vld [vmem:[%s1] sm:$0xf]
  %v18 = vld [vmem:[%s1 + $0x4] sm:$0xf]
  %v19 = vld [vmem:[%s1 + $0x8] sm:$0xf]
  %v20 = vld [vmem:[%s1 + $0xc] sm:$0xf]
  %v21 = vld [vmem:[%s1 + $0x10] sm:$0xf]
  %v22 = vld [vmem:[%s1 + $0x14] sm:$0xf]
  %v23 = vld [vmem:[%s1 + $0x18] sm:$0xf]
  %v24 = vld [vmem:[%s1 + $0x1c] sm:$0xf]
  %v25 = vld [vmem:[%s1 + $0x20] sm:$0xf]
  %v26 = vld [vmem:[%s1 + $0x24] sm:$0xf]
  %v27 = vld [vmem:[%s1 + $0x28] sm:$0xf]
  %v28 = vld [vmem:[%s1 + $0x2c] sm:$0xf]
  %v29 = vld [vmem:[%s1 + $0x30] sm:$0xf]
  %v30 = vld [vmem:[%s1 + $0x34] sm:$0xf]
  %v31 = vld [vmem:[%s1 + $0x38] sm:$0xf]
  %v32 = vld [vmem:[%s1 + $0x3c] sm:$0xf]
  %v33 = vld [vmem:[%s1 + $0x40] sm:$0xf]
  %v34 = vld [vmem:[%s1 + $0x44] sm:$0xf]
  %v35 = vld [vmem:[%s1 + $0x48] sm:$0xf]
  %v36 = vld [vmem:[%s1 + $0x4c] sm:$0xf]
  %v37 = vld [vmem:[%s1 + $0x50] sm:$0xf]
  %v38 = vld [vmem:[%s1 + $0x54] sm:$0xf]
  %v39 = vld [vmem:[%s1 + $0x58] sm:$0xf]
  %v40 = vld [vmem:[%s1 + $0x5c] sm:$0xf]
  %v41 = vld [vmem:[%s1 + $0x60] sm:$0xf]
  %v42 = vld [vmem:[%s1 + $0x64] sm:$0xf]
  %v43 = vld [vmem:[%s1 + $0x68] sm:$0xf]
  %v44 = vld [vmem:[%s1 + $0x6c] sm:$0xf]
  %v45 = vld [vmem:[%s1 + $0x70] sm:$0xf]
  %v46 = vld [vmem:[%s1 + $0x74] sm:$0xf]
  %v47 = vld [vmem:[%s1 + $0x78] sm:$0xf]
  %v48 = vld [vmem:[%s1 + $0x7c] sm:$0xf]
  %v51 = vunpack.c.l.b16 %v15
  %v52 = vunpack.c.h.b16 %v15
  %v53 = vunpack.c.l.b16 %v16
  %v54 = vunpack.c.h.b16 %v16
  %v55 = vpack.c.b16 %v53, %v51
  %v56 = vpack.c.b16 %v54, %v52
  %v91 = vunpack.c.l.b16 %v17
  %v92 = vunpack.c.l.b16 %v18
  %v93 = vunpack.c.l.b16 %v19
  %v94 = vunpack.c.l.b16 %v20
  %v95 = vunpack.c.l.b16 %v21
  %v96 = vunpack.c.l.b16 %v22
  %v97 = vunpack.c.l.b16 %v23
  %v98 = vunpack.c.l.b16 %v24
  %v99 = vunpack.c.l.b16 %v25
  %v100 = vunpack.c.l.b16 %v26
  %v101 = vunpack.c.l.b16 %v27
  %v102 = vunpack.c.l.b16 %v28
  %v103 = vunpack.c.l.b16 %v29
  %v104 = vunpack.c.l.b16 %v30
  %v105 = vunpack.c.l.b16 %v31
  %v106 = vunpack.c.l.b16 %v32
  %v107 = vunpack.c.l.b16 %v33
  %v108 = vunpack.c.l.b16 %v34
  %v109 = vunpack.c.l.b16 %v35
  %v110 = vunpack.c.l.b16 %v36
  %v111 = vunpack.c.l.b16 %v37
  %v112 = vunpack.c.l.b16 %v38
  %v113 = vunpack.c.l.b16 %v39
  %v114 = vunpack.c.l.b16 %v40
  %v115 = vunpack.c.l.b16 %v41
  %v116 = vunpack.c.l.b16 %v42
  %v117 = vunpack.c.l.b16 %v43
  %v118 = vunpack.c.l.b16 %v44
  %v119 = vunpack.c.l.b16 %v45
  %v120 = vunpack.c.l.b16 %v46
  %v121 = vunpack.c.l.b16 %v47
  %v122 = vunpack.c.l.b16 %v48
  %v123 = vpack.c.b16 %v92, %v91
  %v124 = vpack.c.b16 %v94, %v93
  %v125 = vpack.c.b16 %v96, %v95
  %v126 = vpack.c.b16 %v98, %v97
  %v127 = vpack.c.b16 %v100, %v99
  %v128 = vpack.c.b16 %v102, %v101
  %v129 = vpack.c.b16 %v104, %v103
  %v130 = vpack.c.b16 %v106, %v105
  %v131 = vpack.c.b16 %v108, %v107
  %v132 = vpack.c.b16 %v110, %v109
  %v133 = vpack.c.b16 %v112, %v111
  %v134 = vpack.c.b16 %v114, %v113
  %v135 = vpack.c.b16 %v116, %v115
  %v136 = vpack.c.b16 %v118, %v117
  %v137 = vpack.c.b16 %v120, %v119
  %v138 = vpack.c.b16 %v122, %v121
  %155 = vmatprep.subr.bf16.mxu0 0
  %156 = vmatpush1.bf16.msra.mxu0 %v130
  %157 = vmatprep.subr.bf16.mxu0 0
  %158 = vmatpush1.bf16.msra.mxu0 %v129
  %159 = vmatprep.subr.bf16.mxu0 0
  %160 = vmatpush1.bf16.msra.mxu0 %v128
  %161 = vmatprep.subr.bf16.mxu0 0
  %162 = vmatpush1.bf16.msra.mxu0 %v127
  %163 = vmatprep.subr.bf16.mxu0 0
  %164 = vmatpush1.bf16.msra.mxu0 %v126
  %165 = vmatprep.subr.bf16.mxu0 0
  %166 = vmatpush1.bf16.msra.mxu0 %v125
  %167 = vmatprep.subr.bf16.mxu0 0
  %168 = vmatpush1.bf16.msra.mxu0 %v124
  %169 = vmatprep.subr.bf16.mxu0 0
  %170 = vmatpush1.bf16.msra.mxu0 %v123
  %171 = vmatprep.subr.bf16.mxu0 0
  %172 = vmatpush2.bf16.msra.mxu0 %v138
  %173 = vmatprep.subr.bf16.mxu0 0
  %174 = vmatpush2.bf16.msra.mxu0 %v137
  %175 = vmatprep.subr.bf16.mxu0 0
  %176 = vmatpush2.bf16.msra.mxu0 %v136
  %177 = vmatprep.subr.bf16.mxu0 0
  %178 = vmatpush2.bf16.msra.mxu0 %v135
  %179 = vmatprep.subr.bf16.mxu0 0
  %180 = vmatpush2.bf16.msra.mxu0 %v134
  %181 = vmatprep.subr.bf16.mxu0 0
  %182 = vmatpush2.bf16.msra.mxu0 %v133
  %183 = vmatprep.subr.bf16.mxu0 0
  %184 = vmatpush2.bf16.msra.mxu0 %v132
  %185 = vmatprep.subr.bf16.mxu0 0
  %186 = vmatpush2.bf16.msra.mxu0 %v131
  %187 = vmatprep.mubr.bf16.mxu0 %v56
  %188 = vmatmul.mubr.bf16.gmra.mxu0 %v55
  %v189 = vpop.f32.mrf.mxu0
  %v190 = vadd.f32 0.0, %v189
  %v191 = vpop.f32.mrf.mxu0
  %v192 = vpop.f32.mrf.mxu0
  %v193 = vadd.f32 0.0, %v192
  %v194 = vpop.f32.mrf.mxu0
  %195 = vdwg.mxu0
  %vm196 = vcmp.gt.f32.partialorder %v190, 0.0
  %vm197 = vcmp.gt.f32.partialorder %v193, 0.0
  %v198 = vmul.f32 %v190, 0.1
  %v199 = vmul.f32 %v193, 0.1
  %v200 = vsel %vm196, %v190, %v198
  %v201 = vsel %vm197, %v193, %v199
  %v202 = vld [vmem:[%s2] sm:$0xf]
  %v203 = vld [vmem:[%s2 + $0x4] sm:$0xf]
  %v204 = vunpack.c.l.bf16 %v202
  %v205 = vunpack.c.l.bf16 %v203
  %v206 = vadd.f32 %v200, %v204
  %v207 = vadd.f32 %v201, %v205
  %v208 = vpack.c.bf16 %v207, %v206
  %v210 = vunpack.c.l.b16 %v208
  %v211 = vunpack.c.h.b16 %v208
  %v212 = vpack.c.b16 %v210, %v210
  %v213 = vpack.c.b16 %v211, %v211
  %216 = vst [vmem:[%s3] sm:$0xf] %v212
  %217 = vst [vmem:[%s3 + $0x4] sm:$0xf] %v213
  // Predicated region
  $region14: #{_lambda_.12} parent=0 // pred_check
    _
  $region15: #{_lambda_.12} parent=0 // pred_check_branch
    %219 = sbr.rel (0) target = $region17
  $region16: #{_lambda_.12} parent=0 // pred_region
    _
  $region17: #{_lambda_.12} parent=0 // pred_fallthru
    _
  // Predicated region
  $region18: #{_lambda_.12} parent=0 // pred_check
    _
  $region19: #{_lambda_.12} parent=0 // pred_check_branch
    %221 = sbr.rel (0) target = $region21
  $region20: #{_lambda_.12} parent=0 // pred_region
    _
  $region21: #{_lambda_.12} parent=0 // pred_fallthru
    _

// kernel: _lambda_.15
$region0: #{_lambda_.15}
  #allocation0 [shape = 'u32[]', space=smem, size = 0x4, offset = 0x4, fixed_abs, tag = 'smem constant byte address 0x4 - core index']
  #allocation1 [shape = 'u32[144,128]{1,0:T(1,128)}', space=vmem, size = 0x12000, scoped, tag = 'internal scratch']
  %s0 = inlined_call_operand.vmem [shape: bf16[8,32], index: 0, kind: input, shape index: {}]
  %s1 = inlined_call_operand.vmem [shape: bf16[32,128], index: 1, kind: input, shape index: {}]
  %s2 = inlined_call_operand.vmem [shape: bf16[8,128], index: 2, kind: output, shape index: {}]
  %s3 = sld [smem:[#allocation0]]
  $region18: #{_lambda_.15} parent=0
    _
  %s5 = ssub.s32 1, %s3
  %s6 = scalar_select 0, %s5, %s3
  // Predicated region
  $region2: #{_lambda_.15} parent=0 // pred_check
    _
  $region3: #{_lambda_.15} parent=0 // pred_check_branch
    %8 = sbr.rel (0) target = $region5
  $region4: #{_lambda_.15} parent=0 // pred_region
    _
  $region5: #{_lambda_.15} parent=0 // pred_fallthru
    _
  // Predicated region
  $region6: #{_lambda_.15} parent=0 // pred_check
    _
  $region7: #{_lambda_.15} parent=0 // pred_check_branch
    %10 = sbr.rel (0) target = $region9
  $region8: #{_lambda_.15} parent=0 // pred_region
    _
  $region9: #{_lambda_.15} parent=0 // pred_fallthru
    _
  %v12 = vld [vmem:[%s0] sm:$0xf]
  %v13 = vld [vmem:[%s1] sm:$0xf]
  %v14 = vld [vmem:[%s1 + $0x4] sm:$0xf]
  %v15 = vld [vmem:[%s1 + $0x8] sm:$0xf]
  %v16 = vld [vmem:[%s1 + $0xc] sm:$0xf]
  %v21 = vunpack.c.l.b16 %v13
  %v22 = vunpack.c.l.b16 %v14
  %v23 = vunpack.c.l.b16 %v15
  %v24 = vunpack.c.l.b16 %v16
  %v25 = vpack.c.b16 %v22, %v21
  %v26 = vpack.c.b16 %v24, %v23
  %vm29 = vcmask 261120
  %v31 = vsel %vm29, %v12, 0
  %33 = vmatprep.subr.bf16.mxu0 0
  %34 = vmatpush1.bf16.msra.mxu0 0
  %35 = vmatprep.subr.bf16.mxu0 0
  %36 = vmatpush1.bf16.msra.mxu0 0
  %37 = vmatprep.subr.bf16.mxu0 0
  %38 = vmatpush1.bf16.msra.mxu0 0
  %39 = vmatprep.subr.bf16.mxu0 0
  %40 = vmatpush1.bf16.msra.mxu0 0
  %41 = vmatprep.subr.bf16.mxu0 0
  %42 = vmatpush1.bf16.msra.mxu0 0
  %43 = vmatprep.subr.bf16.mxu0 0
  %44 = vmatpush1.bf16.msra.mxu0 0
  %45 = vmatprep.subr.bf16.mxu0 0
  %46 = vmatpush1.bf16.msra.mxu0 %v26
  %47 = vmatprep.subr.bf16.mxu0 0
  %48 = vmatpush1.bf16.msra.mxu0 %v25
  %49 = vmatprep.subr.bf16.mxu0 0
  %50 = vmatpush2.bf16.msra.mxu0 0
  %51 = vmatprep.subr.bf16.mxu0 0
  %52 = vmatpush2.bf16.msra.mxu0 0
  %53 = vmatprep.subr.bf16.mxu0 0
  %54 = vmatpush2.bf16.msra.mxu0 0
  %55 = vmatprep.subr.bf16.mxu0 0
  %56 = vmatpush2.bf16.msra.mxu0 0
  %57 = vmatprep.subr.bf16.mxu0 0
  %58 = vmatpush2.bf16.msra.mxu0 0
  %59 = vmatprep.subr.bf16.mxu0 0
  %60 = vmatpush2.bf16.msra.mxu0 0
  %61 = vmatprep.subr.bf16.mxu0 0
  %62 = vmatpush2.bf16.msra.mxu0 0
  %63 = vmatprep.subr.bf16.mxu0 0
  %64 = vmatpush2.bf16.msra.mxu0 0
  %65 = vmatprep.mubr.bf16.mxu0 0
  %66 = vmatmul.mubr.bf16.gmra.mxu0 %v31
  %v67 = vpop.f32.mrf.mxu0
  %v68 = vadd.f32 0.0, %v67
  %v69 = vpop.f32.mrf.mxu0
  %v70 = vpop.f32.mrf.mxu0
  %v71 = vpop.f32.mrf.mxu0
  %72 = vdwg.mxu0
  %vm73 = vcmp.gt.f32.partialorder %v68, 0.0
  %v74 = vmul.f32 %v68, 0.1
  %v75 = vsel %vm73, %v68, %v74
  %v76 = vpack.c.bf16 %v75, %v75
  %77 = vst [vmem:[%s2] sm:$0xf] %v76
  // Predicated region
  $region10: #{_lambda_.15} parent=0 // pred_check
    _
  $region11: #{_lambda_.15} parent=0 // pred_check_branch
    %79 = sbr.rel (0) target = $region13
  $region12: #{_lambda_.15} parent=0 // pred_region
    _
  $region13: #{_lambda_.15} parent=0 // pred_fallthru
    _
  // Predicated region
  $region14: #{_lambda_.15} parent=0 // pred_check
    _
  $region15: #{_lambda_.15} parent=0 // pred_check_branch
    %81 = sbr.rel (0) target = $region17
  $region16: #{_lambda_.15} parent=0 // pred_region
    _
  $region17: #{_lambda_.15} parent=0 // pred_fallthru
    _

// kernel: _lambda_.16
$region0: #{_lambda_.16}
  #allocation0 [shape = 'u32[]', space=smem, size = 0x4, offset = 0x4, fixed_abs, tag = 'smem constant byte address 0x4 - core index']
  #allocation1 [shape = 'u32[144,128]{1,0:T(1,128)}', space=vmem, size = 0x12000, scoped, tag = 'internal scratch']
  %s0 = inlined_call_operand.vmem [shape: bf16[16,32], index: 0, kind: input, shape index: {}]
  %s1 = inlined_call_operand.vmem [shape: bf16[32,512], index: 1, kind: input, shape index: {}]
  %s2 = inlined_call_operand.vmem [shape: bf16[16,512], index: 2, kind: output, shape index: {}]
  %s3 = sld [smem:[#allocation0]]
  $region113: #{_lambda_.16} parent=0
    _
  %s5 = ssub.s32 1, %s3
  %s6 = scalar_select 0, %s5, %s3
  $region1: #{_lambda_.16} parent=0
    #allocation2 [shape = 'u8[32768]{0}', space=vmem, size = 0x8000, scoped, tag = 'input window, operand 1']
    #allocation3 [shape = 'u8[16384]{0}', space=vmem, size = 0x4000, scoped, tag = 'output window, operand 0']
    loop: start=0, step=1, limit=4
    $region2: #{_lambda_.16} parent=1 // loop_pre_header
      _
    $region3: #{_lambda_.16} parent=1 // loop_header
      %s8 = sphi 0, %s12
      %p9 = scmp.ge.s32.totalorder %s8, 4
      %s16 = sphi 0, %s16
      %s18 = sphi 0, %s16
      %s19 = sphi 0, %s18
      %s33 = sphi 0, %s19
      %s39 = sphi 0, %s41
      %s42 = sphi 0, %s39
      %s43 = sphi 0, %s42
      %s59 = sphi 0, %s43
      %s65 = sphi 0, %s67
      %s68 = sphi 0, %s65
      %s69 = sphi 0, %s68
      %s85 = sphi 0, %s69
    $region4: #{_lambda_.16} parent=1 // loop_header_branch
      %11 = sbr.rel (%p9) target = $region8
    $region5: #{_lambda_.16} parent=1 // loop_body
      %s13 = ssub.s32 %s8, 1
      %s14 = ssub.s32 %s8, 2
      %s15 = sadd.s32 %s8, 1
      %s17 = sadd.s32 %s16, 1
      %p20 = scmp.eq.s32.totalorder %s8, 1
      %p21 = scmp.ne.s32.totalorder %s16, %s18
      %p22 = scmp.eq.s32.totalorder %s8, 0
      %p23 = por %p21, %p22
      %p24 = scmp.ne.s32.totalorder %s16, %s18
      %p25 = scmp.eq.s32.totalorder %s13, 1
      %p26 = por %p24, %p25
      %p27 = scmp.ne.s32.totalorder %s18, %s19
      %p28 = scmp.eq.s32.totalorder %s13, 0
      %p29 = por %p27, %p28
      %p30 = scmp.ne.s32.totalorder %s18, %s19
      %p31 = scmp.eq.s32.totalorder %s14, 1
      %p32 = por %p30, %p31
      %p34 = scmp.ne.s32.totalorder %s19, %s33
      %p35 = scmp.eq.s32.totalorder %s14, 0
      %p36 = por %p34, %p35
      %s37 = ssub.s32 %s8, %s15
      %p38 = scmp.eq.s32.totalorder %s37, 0
      %s40 = sadd.s32 %s39, 1
      %s41 = scalar_select %p38, %s39, %s40
      %p44 = pneg %p38
      %p45 = scmp.eq.s32.totalorder %s8, 1
      %p46 = por %p44, %p45
      %p47 = scmp.ne.s32.totalorder %s39, %s42
      %p48 = scmp.eq.s32.totalorder %s8, 0
      %p49 = por %p47, %p48
      %p50 = scmp.ne.s32.totalorder %s39, %s42
      %p51 = scmp.eq.s32.totalorder %s13, 1
      %p52 = por %p50, %p51
      %p53 = scmp.ne.s32.totalorder %s42, %s43
      %p54 = scmp.eq.s32.totalorder %s13, 0
      %p55 = por %p53, %p54
      %p56 = scmp.ne.s32.totalorder %s42, %s43
      %p57 = scmp.eq.s32.totalorder %s14, 1
      %p58 = por %p56, %p57
      %p60 = scmp.ne.s32.totalorder %s43, %s59
      %p61 = scmp.eq.s32.totalorder %s14, 0
      %p62 = por %p60, %p61
      %s63 = ssub.s32 %s8, %s15
      %p64 = scmp.eq.s32.totalorder %s63, 0
      %s66 = sadd.s32 %s65, 1
      %s67 = scalar_select %p64, %s65, %s66
      %p70 = pneg %p64
      %p71 = scmp.eq.s32.totalorder %s8, 1
      %p72 = por %p70, %p71
      %p73 = scmp.ne.s32.totalorder %s65, %s68
      %p74 = scmp.eq.s32.totalorder %s8, 0
      %p75 = por %p73, %p74
      %p76 = scmp.ne.s32.totalorder %s65, %s68
      %p77 = scmp.eq.s32.totalorder %s13, 1
      %p78 = por %p76, %p77
      %p79 = scmp.ne.s32.totalorder %s68, %s69
      %p80 = scmp.eq.s32.totalorder %s13, 0
      %p81 = por %p79, %p80
      %p82 = scmp.ne.s32.totalorder %s68, %s69
      %p83 = scmp.eq.s32.totalorder %s14, 1
      %p84 = por %p82, %p83
      %p86 = scmp.ne.s32.totalorder %s69, %s85
      %p87 = scmp.eq.s32.totalorder %s14, 0
      %p88 = por %p86, %p87
      %p89 = scmp.le.s32.totalorder 1, %s8
      %p90 = scmp.lt.s32.totalorder %s8, 3
      %p91 = pnand %p89, %p90
      %p92 = pneg %p91
      // Predicated region
      $region9: #{_lambda_.16} parent=5 // pred_check
        _
      $region10: #{_lambda_.16} parent=5 // pred_check_branch
        %94 = sbr.rel (%p91) target = $region12
      $region11: #{_lambda_.16} parent=5 // pred_region
        %s95 = ssub.s32 %s8, 1
        // Predicated region
        $region13: #{_lambda_.16} parent=11 // pred_check
          %p96 = pneg %p29
        $region14: #{_lambda_.16} parent=11 // pred_check_branch
          %98 = sbr.rel (%p96) target = $region16
        $region15: #{_lambda_.16} parent=11 // pred_region
          _
        $region16: #{_lambda_.16} parent=11 // pred_fallthru
          _
      $region12: #{_lambda_.16} parent=5 // pred_fallthru
        _
      %p99 = scmp.lt.s32.totalorder %s8, 2
      // Predicated region
      $region17: #{_lambda_.16} parent=5 // pred_check
        %p100 = pneg %p99
      $region18: #{_lambda_.16} parent=5 // pred_check_branch
        %102 = sbr.rel (%p100) target = $region20
      $region19: #{_lambda_.16} parent=5 // pred_region
        // Predicated region
        $region21: #{_lambda_.16} parent=19 // pred_check
          %p103 = pneg %p49
        $region22: #{_lambda_.16} parent=19 // pred_check_branch
          %105 = sbr.rel (%p103) target = $region24
        $region23: #{_lambda_.16} parent=19 // pred_region
          %s106 = sand.u32 %s39, 1
          %s107 = sand.u32 %s39, 1
          %s108 = smul.addr %s107, 32
          %s109 = scalar_lea.vmem [#allocation2], %s108
          %s110 = smul.u32 2, %s8
          %s111 = smul.addr %s110, 4
          %s112 = scalar_lea.vmem %s1, %s111
          // Predicated region
          $region25: #{_lambda_.16} parent=23 // pred_check
            _
          $region26: #{_lambda_.16} parent=23 // pred_check_branch
            %114 = sbr.rel (0) target = $region28
          $region27: #{_lambda_.16} parent=23 // pred_region
            // Predicated region
            $region29: #{_lambda_.16} parent=27 // pred_check
              _
            $region30: #{_lambda_.16} parent=27 // pred_check_branch
              %116 = sbr.rel (0) target = $region32
            $region31: #{_lambda_.16} parent=27 // pred_region
              // Predicated region
              $region44: #{_lambda_.16} parent=31 // pred_check
                _
              $region45: #{_lambda_.16} parent=31 // pred_check_branch
                %138 = sbr.rel (0) target = $region47
              $region46: #{_lambda_.16} parent=31 // pred_region
                loop: start=0, step=1, limit=1
                $region48: #{_lambda_.16} parent=46 // loop_pre_header
                  _
                $region49: #{_lambda_.16} parent=46 // loop_header
                  %s140 = sphi 0, %s144
                  %p141 = scmp.ge.s32.totalorder %s140, 1
                  %s145 = sphi %s112, %s112
                  %s146 = sphi %s109, %s109
                $region50: #{_lambda_.16} parent=46 // loop_header_branch
                  %143 = sbr.rel (%p141) target = $region54
                $region51: #{_lambda_.16} parent=46 // loop_body
                  %v147 = vld [vmem:[%s145] sm:$0xff]
                  %148 = vst [vmem:[%s146] sm:$0xff] %v147
                  %v149 = vld [vmem:[%s145 + $0x10] sm:$0xff]
                  %150 = vst [vmem:[%s146 + $0x8] sm:$0xff] %v149
                  %v151 = vld [vmem:[%s145 + $0x20] sm:$0xff]
                  %152 = vst [vmem:[%s146 + $0x10] sm:$0xff] %v151
                  %v153 = vld [vmem:[%s145 + $0x30] sm:$0xff]
                  %154 = vst [vmem:[%s146 + $0x18] sm:$0xff] %v153
                $region52: #{_lambda_.16} parent=46 // loop_footer
                  %s144 = sadd.s32 1, %s140
                $region53: #{_lambda_.16} parent=46 // loop_footer_branch
                  %139 = sbr.rel target = $region49
                $region54: #{_lambda_.16} parent=46 // loop_exit
                  _
              $region47: #{_lambda_.16} parent=31 // pred_fallthru
                _
              // Predicated region
              $region55: #{_lambda_.16} parent=31 // pred_check
                _
              $region56: #{_lambda_.16} parent=31 // pred_check_branch
                %156 = sbr.rel target = $region58
              $region57: #{_lambda_.16} parent=31 // pred_region
                _
              $region58: #{_lambda_.16} parent=31 // pred_fallthru
                _
            $region32: #{_lambda_.16} parent=27 // pred_fallthru
              _
            // Predicated region
            $region33: #{_lambda_.16} parent=27 // pred_check
              _
            $region34: #{_lambda_.16} parent=27 // pred_check_branch
              %118 = sbr.rel target = $region36
            $region35: #{_lambda_.16} parent=27 // pred_region
              %s120 = ssub.s32 256, 1
              loop: start=0, step=1, limit=1
              $region37: #{_lambda_.16} parent=35 // loop_pre_header
                _
              $region38: #{_lambda_.16} parent=35 // loop_header
                %s122 = sphi 0, %s126
                %p123 = scmp.ge.s32.totalorder %s122, 1
                %s127 = sphi %s112, %s112
                %s128 = sphi %s109, %s109
              $region39: #{_lambda_.16} parent=35 // loop_header_branch
                %125 = sbr.rel (%p123) target = $region43
              $region40: #{_lambda_.16} parent=35 // loop_body
                %v129 = vld [vmem:[%s127] sm:%s120]
                %130 = vst [vmem:[%s128] sm:%s120] %v129
                %v131 = vld [vmem:[%s127 + $0x10] sm:%s120]
                %132 = vst [vmem:[%s128 + $0x8] sm:%s120] %v131
                %v133 = vld [vmem:[%s127 + $0x20] sm:%s120]
                %134 = vst [vmem:[%s128 + $0x10] sm:%s120] %v133
                %v135 = vld [vmem:[%s127 + $0x30] sm:%s120]
                %136 = vst [vmem:[%s128 + $0x18] sm:%s120] %v135
              $region41: #{_lambda_.16} parent=35 // loop_footer
                %s126 = sadd.s32 1, %s122
              $region42: #{_lambda_.16} parent=35 // loop_footer_branch
                %121 = sbr.rel target = $region38
              $region43: #{_lambda_.16} parent=35 // loop_exit
                _
            $region36: #{_lambda_.16} parent=27 // pred_fallthru
              _
          $region28: #{_lambda_.16} parent=23 // pred_fallthru
            _
          %157 = vnop
        $region24: #{_lambda_.16} parent=19 // pred_fallthru
          _
      $region20: #{_lambda_.16} parent=5 // pred_fallthru
        _
      %p158 = scmp.le.s32.totalorder 1, %s8
      %p159 = scmp.lt.s32.totalorder %s8, 3
      %p160 = pnand %p158, %p159
      %p161 = pneg %p160
      // Predicated region
      $region59: #{_lambda_.16} parent=5 // pred_check
        _
      $region60: #{_lambda_.16} parent=5 // pred_check_branch
        %163 = sbr.rel (%p160) target = $region62
      $region61: #{_lambda_.16} parent=5 // pred_region
        %s164 = ssub.s32 %s8, 1
        %s165 = sand.u32 %s42, 1
        %s166 = sand.u32 %s42, 1
        %s167 = smul.addr %s166, 32
        %s168 = scalar_lea.vmem [#allocation2], %s167
        // Predicated region
        $region63: #{_lambda_.16} parent=61 // pred_check
          %p169 = pneg %p55
        $region64: #{_lambda_.16} parent=61 // pred_check_branch
          %171 = sbr.rel (%p169) target = $region66
        $region65: #{_lambda_.16} parent=61 // pred_region
          _
        $region66: #{_lambda_.16} parent=61 // pred_fallthru
          _
        %p172 = pneg %p29
        %p173 = pneg %p26
        %s174 = sand.u32 %s42, 1
        %s175 = sand.u32 %s42, 1
        %s176 = smul.addr %s175, 32
        %s177 = scalar_lea.vmem [#allocation2], %s176
        %p178 = pneg %p55
        %p179 = pneg %p52
        %p180 = pneg %p81
        %p181 = pneg %p78
        %s182 = sand.u32 %s68, 1
        %s183 = sand.u32 %s68, 1
        %s184 = smul.addr %s183, 16
        %s185 = scalar_lea.vmem [#allocation3], %s184
        %s186 = smul.u32 2, %s13
        %s187 = smul.u32 2, %s13
        %v189 = vld [vmem:[%s0] sm:$0xf]
        %v190 = vld [vmem:[%s0 + $0x4] sm:$0xf]
        %v191 = vld [vmem:[%s168] sm:$0xff]
        %v192 = vld [vmem:[%s168 + $0x8] sm:$0xff]
        %v193 = vld [vmem:[%s168 + $0x10] sm:$0xff]
        %v194 = vld [vmem:[%s168 + $0x18] sm:$0xff]
        %v197 = vunpack.c.l.b16 %v189
        %v198 = vunpack.c.l.b16 %v190
        %v199 = vpack.c.b16 %v198, %v197
        %v204 = vunpack.c.l.b16 %v191
        %v205 = vunpack.c.h.b16 %v191
        %v206 = vunpack.c.l.b16 %v192
        %v207 = vunpack.c.h.b16 %v192
        %v208 = vunpack.c.l.b16 %v193
        %v209 = vunpack.c.h.b16 %v193
        %v210 = vunpack.c.l.b16 %v194
        %v211 = vunpack.c.h.b16 %v194
        %v212 = vpack.c.b16 %v206, %v204
        %v213 = vpack.c.b16 %v207, %v205
        %v214 = vpack.c.b16 %v210, %v208
        %v215 = vpack.c.b16 %v211, %v209
        %vm220 = vcmask 261120
        %v222 = vsel %vm220, %v199, 0
        %224 = vmatprep.subr.bf16.mxu0 0
        %225 = vmatpush1.bf16.msra.mxu0 0
        %226 = vmatprep.subr.bf16.mxu0 0
        %227 = vmatpush1.bf16.msra.mxu0 0
        %228 = vmatprep.subr.bf16.mxu0 0
        %229 = vmatpush1.bf16.msra.mxu0 0
        %230 = vmatprep.subr.bf16.mxu0 0
        %231 = vmatpush1.bf16.msra.mxu0 0
        %232 = vmatprep.subr.bf16.mxu0 0
        %233 = vmatpush1.bf16.msra.mxu0 0
        %234 = vmatprep.subr.bf16.mxu0 0
        %235 = vmatpush1.bf16.msra.mxu0 0
        %236 = vmatprep.subr.bf16.mxu0 %v215
        %237 = vmatpush1.bf16.msra.mxu0 %v214
        %238 = vmatprep.subr.bf16.mxu0 %v213
        %239 = vmatpush1.bf16.msra.mxu0 %v212
        %240 = vmatprep.subr.bf16.mxu0 0
        %241 = vmatpush2.bf16.msra.mxu0 0
        %242 = vmatprep.subr.bf16.mxu0 0
        %243 = vmatpush2.bf16.msra.mxu0 0
        %244 = vmatprep.subr.bf16.mxu0 0
        %245 = vmatpush2.bf16.msra.mxu0 0
        %246 = vmatprep.subr.bf16.mxu0 0
        %247 = vmatpush2.bf16.msra.mxu0 0
        %248 = vmatprep.subr.bf16.mxu0 0
        %249 = vmatpush2.bf16.msra.mxu0 0
        %250 = vmatprep.subr.bf16.mxu0 0
        %251 = vmatpush2.bf16.msra.mxu0 0
        %252 = vmatprep.subr.bf16.mxu0 0
        %253 = vmatpush2.bf16.msra.mxu0 0
        %254 = vmatprep.subr.bf16.mxu0 0
        %255 = vmatpush2.bf16.msra.mxu0 0
        %256 = vmatprep.mubr.bf16.mxu0 0
        %257 = vmatmul.mubr.bf16.gmra.mxu0 %v222
        %v258 = vpop.f32.mrf.mxu0
        %v259 = vadd.f32 0.0, %v258
        %v260 = vpop.f32.mrf.mxu0
        %v261 = vadd.f32 0.0, %v260
        %v262 = vpop.f32.mrf.mxu0
        %v263 = vadd.f32 0.0, %v262
        %v264 = vpop.f32.mrf.mxu0
        %v265 = vadd.f32 0.0, %v264
        %266 = vdwg.mxu0
        %v267 = vpack.c.bf16 %v263, %v259
        %v268 = vpack.c.bf16 %v265, %v261
        %v271 = vunpack.c.l.b16 %v267
        %v272 = vunpack.c.l.b16 %v268
        %v273 = vunpack.c.h.b16 %v267
        %v274 = vunpack.c.h.b16 %v268
        %v275 = vpack.c.b16 %v272, %v271
        %v276 = vpack.c.b16 %v274, %v273
        %279 = vst [vmem:[%s185] sm:$0xff] %v275
        %280 = vst [vmem:[%s185 + $0x8] sm:$0xff] %v276
        %s281 = sand.u32 %s68, 1
        %s282 = sand.u32 %s68, 1
        %s283 = smul.addr %s282, 16
        %s284 = scalar_lea.vmem [#allocation3], %s283
        // Predicated region
        $region67: #{_lambda_.16} parent=61 // pred_check
          %p285 = pneg %p78
        $region68: #{_lambda_.16} parent=61 // pred_check_branch
          %287 = sbr.rel (%p285) target = $region70
        $region69: #{_lambda_.16} parent=61 // pred_region
          %s288 = smul.u32 2, %s13
          %s289 = smul.addr %s288, 4
          %s290 = scalar_lea.vmem %s2, %s289
          // Predicated region
          $region71: #{_lambda_.16} parent=69 // pred_check
            _
          $region72: #{_lambda_.16} parent=69 // pred_check_branch
            %292 = sbr.rel (0) target = $region74
          $region73: #{_lambda_.16} parent=69 // pred_region
            // Predicated region
            $region75: #{_lambda_.16} parent=73 // pred_check
              _
            $region76: #{_lambda_.16} parent=73 // pred_check_branch
              %294 = sbr.rel (0) target = $region78
            $region77: #{_lambda_.16} parent=73 // pred_region
              // Predicated region
              $region90: #{_lambda_.16} parent=77 // pred_check
                _
              $region91: #{_lambda_.16} parent=77 // pred_check_branch
                %312 = sbr.rel (0) target = $region93
              $region92: #{_lambda_.16} parent=77 // pred_region
                loop: start=0, step=1, limit=1
                $region94: #{_lambda_.16} parent=92 // loop_pre_header
                  _
                $region95: #{_lambda_.16} parent=92 // loop_header
                  %s314 = sphi 0, %s318
                  %p315 = scmp.ge.s32.totalorder %s314, 1
                  %s319 = sphi %s284, %s284
                  %s320 = sphi %s290, %s290
                $region96: #{_lambda_.16} parent=92 // loop_header_branch
                  %317 = sbr.rel (%p315) target = $region100
                $region97: #{_lambda_.16} parent=92 // loop_body
                  %v321 = vld [vmem:[%s319] sm:$0xff]
                  %322 = vst [vmem:[%s320] sm:$0xff] %v321
                  %v323 = vld [vmem:[%s319 + $0x8] sm:$0xff]
                  %324 = vst [vmem:[%s320 + $0x10] sm:$0xff] %v323
                $region98: #{_lambda_.16} parent=92 // loop_footer
                  %s318 = sadd.s32 1, %s314
                $region99: #{_lambda_.16} parent=92 // loop_footer_branch
                  %313 = sbr.rel target = $region95
                $region100: #{_lambda_.16} parent=92 // loop_exit
                  _
              $region93: #{_lambda_.16} parent=77 // pred_fallthru
                _
              // Predicated region
              $region101: #{_lambda_.16} parent=77 // pred_check
                _
              $region102: #{_lambda_.16} parent=77 // pred_check_branch
                %326 = sbr.rel target = $region104
              $region103: #{_lambda_.16} parent=77 // pred_region
                _
              $region104: #{_lambda_.16} parent=77 // pred_fallthru
                _
            $region78: #{_lambda_.16} parent=73 // pred_fallthru
              _
            // Predicated region
            $region79: #{_lambda_.16} parent=73 // pred_check
              _
            $region80: #{_lambda_.16} parent=73 // pred_check_branch
              %296 = sbr.rel target = $region82
            $region81: #{_lambda_.16} parent=73 // pred_region
              %s298 = ssub.s32 256, 1
              loop: start=0, step=1, limit=1
              $region83: #{_lambda_.16} parent=81 // loop_pre_header
                _
              $region84: #{_lambda_.16} parent=81 // loop_header
                %s300 = sphi 0, %s304
                %p301 = scmp.ge.s32.totalorder %s300, 1
                %s305 = sphi %s284, %s284
                %s306 = sphi %s290, %s290
              $region85: #{_lambda_.16} parent=81 // loop_header_branch
                %303 = sbr.rel (%p301) target = $region89
              $region86: #{_lambda_.16} parent=81 // loop_body
                %v307 = vld [vmem:[%s305] sm:%s298]
                %308 = vst [vmem:[%s306] sm:%s298] %v307
                %v309 = vld [vmem:[%s305 + $0x8] sm:%s298]
                %310 = vst [vmem:[%s306 + $0x10] sm:%s298] %v309
              $region87: #{_lambda_.16} parent=81 // loop_footer
                %s304 = sadd.s32 1, %s300
              $region88: #{_lambda_.16} parent=81 // loop_footer_branch
                %299 = sbr.rel target = $region84
              $region89: #{_lambda_.16} parent=81 // loop_exit
                _
            $region82: #{_lambda_.16} parent=73 // pred_fallthru
              _
          $region74: #{_lambda_.16} parent=69 // pred_fallthru
            _
          %327 = vnop
        $region70: #{_lambda_.16} parent=61 // pred_fallthru
          _
      $region62: #{_lambda_.16} parent=5 // pred_fallthru
        _
      %p328 = scmp.le.s32.totalorder 2, %s8
      // Predicated region
      $region105: #{_lambda_.16} parent=5 // pred_check
        %p329 = pneg %p328
      $region106: #{_lambda_.16} parent=5 // pred_check_branch
        %331 = sbr.rel (%p329) target = $region108
      $region107: #{_lambda_.16} parent=5 // pred_region
        %s332 = ssub.s32 %s8, 2
        // Predicated region
        $region109: #{_lambda_.16} parent=107 // pred_check
          %p333 = pneg %p84
        $region110: #{_lambda_.16} parent=107 // pred_check_branch
          %335 = sbr.rel (%p333) target = $region112
        $region111: #{_lambda_.16} parent=107 // pred_region
          %s336 = sand.u32 %s69, 1
          %s337 = sand.u32 %s69, 1
          %s338 = smul.addr %s337, 16
          %s339 = scalar_lea.vmem [#allocation3], %s338
        $region112: #{_lambda_.16} parent=107 // pred_fallthru
          _
      $region108: #{_lambda_.16} parent=5 // pred_fallthru
        _
    $region6: #{_lambda_.16} parent=1 // loop_footer
      %s12 = sadd.s32 1, %s8
    $region7: #{_lambda_.16} parent=1 // loop_footer_branch
      %7 = sbr.rel target = $region3
    $region8: #{_lambda_.16} parent=1 // loop_exit
      _

// kernel: tile.26
$region0: #{tile.26}
  #allocation0 [shape = 's32[1]{0}', space=sflag, size = 0x4, scoped, tag = 'scoped memory for tile.26']
  %s0 = inlined_call_operand.vmem [shape: f32[2], index: 0, kind: input, shape index: {}]
  %s1 = inlined_call_operand.vmem [shape: f32[256,2], index: 1, kind: output, shape index: {}]
  // Predicated region
  $region2: #{tile.26} parent=0 // pred_check
    _
  $region3: #{tile.26} parent=0 // pred_check_branch
    %3 = sbr.rel (0) target = $region5
  $region4: #{tile.26} parent=0 // pred_region
    _
  $region5: #{tile.26} parent=0 // pred_fallthru
    _
  %v4 = vld [vmem:[%s0] ss:$0 sm:$0xff]
  %5 = vst [vmem:[%s1] sm:$0xff] %v4
  %s6 = scalar_lea.vmem %s1, 8
  %7 = vst [vmem:[%s6] sm:$0xff] %v4
  %s8 = scalar_lea.vmem %s1, 16
  %9 = vst [vmem:[%s8] sm:$0xff] %v4
  %s10 = scalar_lea.vmem %s1, 24
  %11 = vst [vmem:[%s10] sm:$0xff] %v4
  %s12 = scalar_lea.vmem %s1, 32
  %13 = vst [vmem:[%s12] sm:$0xff] %v4
  %s14 = scalar_lea.vmem %s1, 40
  %15 = vst [vmem:[%s14] sm:$0xff] %v4
  %s16 = scalar_lea.vmem %s1, 48
  %17 = vst [vmem:[%s16] sm:$0xff] %v4
  %s18 = scalar_lea.vmem %s1, 56
  %19 = vst [vmem:[%s18] sm:$0xff] %v4
  %s20 = scalar_lea.vmem %s1, 64
  %21 = vst [vmem:[%s20] sm:$0xff] %v4
  %s22 = scalar_lea.vmem %s1, 72
  %23 = vst [vmem:[%s22] sm:$0xff] %v4
  %s24 = scalar_lea.vmem %s1, 80
  %25 = vst [vmem:[%s24] sm:$0xff] %v4
  %s26 = scalar_lea.vmem %s1, 88
  %27 = vst [vmem:[%s26] sm:$0xff] %v4
  %s28 = scalar_lea.vmem %s1, 96
  %29 = vst [vmem:[%s28] sm:$0xff] %v4
  %s30 = scalar_lea.vmem %s1, 104
  %31 = vst [vmem:[%s30] sm:$0xff] %v4
  %s32 = scalar_lea.vmem %s1, 112
  %33 = vst [vmem:[%s32] sm:$0xff] %v4
  %s34 = scalar_lea.vmem %s1, 120
  %35 = vst [vmem:[%s34] sm:$0xff] %v4
  %s36 = scalar_lea.vmem %s1, 128
  %37 = vst [vmem:[%s36] sm:$0xff] %v4
  %s38 = scalar_lea.vmem %s1, 136
  %39 = vst [vmem:[%s38] sm:$0xff] %v4
  %s40 = scalar_lea.vmem %s1, 144
  %41 = vst [vmem:[%s40] sm:$0xff] %v4
  %s42 = scalar_lea.vmem %s1, 152
  %43 = vst [vmem:[%s42] sm:$0xff] %v4
  %s44 = scalar_lea.vmem %s1, 160
  %45 = vst [vmem:[%s44] sm:$0xff] %v4
  %s46 = scalar_lea.vmem %s1, 168
  %47 = vst [vmem:[%s46] sm:$0xff] %v4
  %s48 = scalar_lea.vmem %s1, 176
  %49 = vst [vmem:[%s48] sm:$0xff] %v4
  %s50 = scalar_lea.vmem %s1, 184
  %51 = vst [vmem:[%s50] sm:$0xff] %v4
  %s52 = scalar_lea.vmem %s1, 192
  %53 = vst [vmem:[%s52] sm:$0xff] %v4
  %s54 = scalar_lea.vmem %s1, 200
  %55 = vst [vmem:[%s54] sm:$0xff] %v4
  %s56 = scalar_lea.vmem %s1, 208
  %57 = vst [vmem:[%s56] sm:$0xff] %v4
  %s58 = scalar_lea.vmem %s1, 216
  %59 = vst [vmem:[%s58] sm:$0xff] %v4
  %s60 = scalar_lea.vmem %s1, 224
  %61 = vst [vmem:[%s60] sm:$0xff] %v4
  %s62 = scalar_lea.vmem %s1, 232
  %63 = vst [vmem:[%s62] sm:$0xff] %v4
  %s64 = scalar_lea.vmem %s1, 240
  %65 = vst [vmem:[%s64] sm:$0xff] %v4
  %s66 = scalar_lea.vmem %s1, 248
  %67 = vst [vmem:[%s66] sm:$0xff] %v4

// kernel: tile.18
$region0: #{tile.18}
  #allocation0 [shape = 's32[1]{0}', space=sflag, size = 0x4, scoped, tag = 'scoped memory for tile.18']
  %s0 = inlined_call_operand.vmem [shape: f32[2], index: 0, kind: input, shape index: {}]
  %s1 = inlined_call_operand.vmem [shape: f32[64,2], index: 1, kind: output, shape index: {}]
  // Predicated region
  $region2: #{tile.18} parent=0 // pred_check
    _
  $region3: #{tile.18} parent=0 // pred_check_branch
    %3 = sbr.rel (0) target = $region5
  $region4: #{tile.18} parent=0 // pred_region
    _
  $region5: #{tile.18} parent=0 // pred_fallthru
    _
  %v4 = vld [vmem:[%s0] ss:$0 sm:$0xff]
  %5 = vst [vmem:[%s1] sm:$0xff] %v4
  %s6 = scalar_lea.vmem %s1, 8
  %7 = vst [vmem:[%s6] sm:$0xff] %v4
  %s8 = scalar_lea.vmem %s1, 16
  %9 = vst [vmem:[%s8] sm:$0xff] %v4
  %s10 = scalar_lea.vmem %s1, 24
  %11 = vst [vmem:[%s10] sm:$0xff] %v4
  %s12 = scalar_lea.vmem %s1, 32
  %13 = vst [vmem:[%s12] sm:$0xff] %v4
  %s14 = scalar_lea.vmem %s1, 40
  %15 = vst [vmem:[%s14] sm:$0xff] %v4
  %s16 = scalar_lea.vmem %s1, 48
  %17 = vst [vmem:[%s16] sm:$0xff] %v4
  %s18 = scalar_lea.vmem %s1, 56
  %19 = vst [vmem:[%s18] sm:$0xff] %v4

// kernel: _lambda_.17
$region0: #{_lambda_.17}
  #allocation0 [shape = 'u32[]', space=smem, size = 0x4, offset = 0x4, fixed_abs, tag = 'smem constant byte address 0x4 - core index']
  #allocation1 [shape = 'u32[144,128]{1,0:T(1,128)}', space=vmem, size = 0x12000, scoped, tag = 'internal scratch']
  %s0 = inlined_call_operand.vmem [shape: bf16[2,8,512], index: 0, kind: input, shape index: {}]
  %s1 = inlined_call_operand.vmem [shape: f32[8,512], index: 1, kind: input, shape index: {}]
  %s2 = inlined_call_operand.vmem [shape: f32[8,512], index: 2, kind: input, shape index: {}]
  %s3 = inlined_call_operand.vmem [shape: f32[2,8,512], index: 3, kind: output, shape index: {}]
  %s4 = sld [smem:[#allocation0]]
  $region102: #{_lambda_.17} parent=0
    _
  %s6 = ssub.s32 1, %s4
  %s7 = scalar_select 0, %s6, %s4
  $region1: #{_lambda_.17} parent=0
    #allocation2 [shape = 'u8[16384]{0}', space=vmem, size = 0x4000, scoped, tag = 'input window, operand 0']
    #allocation3 [shape = 'u8[32768]{0}', space=vmem, size = 0x8000, scoped, tag = 'output window, operand 0']
    loop: start=0, step=1, limit=4
    $region2: #{_lambda_.17} parent=1 // loop_pre_header
      _
    $region3: #{_lambda_.17} parent=1 // loop_header
      %s9 = sphi 0, %s13
      %p10 = scmp.ge.s32.totalorder %s9, 4
      %s19 = sphi 0, %s21
      %s22 = sphi 0, %s19
      %s23 = sphi 0, %s22
      %s39 = sphi 0, %s23
      %s45 = sphi 0, %s47
      %s48 = sphi 0, %s45
      %s49 = sphi 0, %s48
      %s65 = sphi 0, %s49
      %s71 = sphi 0, %s73
      %s74 = sphi 0, %s71
      %s75 = sphi 0, %s74
      %s91 = sphi 0, %s75
      %s97 = sphi 0, %s99
      %s100 = sphi 0, %s97
      %s101 = sphi 0, %s100
      %s117 = sphi 0, %s101
    $region4: #{_lambda_.17} parent=1 // loop_header_branch
      %12 = sbr.rel (%p10) target = $region8
    $region5: #{_lambda_.17} parent=1 // loop_body
      %s14 = ssub.s32 %s9, 1
      %s15 = ssub.s32 %s9, 2
      %s16 = sadd.s32 %s9, 1
      %s17 = ssub.s32 %s9, %s16
      %p18 = scmp.eq.s32.totalorder %s17, 0
      %s20 = sadd.s32 %s19, 1
      %s21 = scalar_select %p18, %s19, %s20
      %p24 = pneg %p18
      %p25 = scmp.eq.s32.totalorder %s9, 1
      %p26 = por %p24, %p25
      %p27 = scmp.ne.s32.totalorder %s19, %s22
      %p28 = scmp.eq.s32.totalorder %s9, 0
      %p29 = por %p27, %p28
      %p30 = scmp.ne.s32.totalorder %s19, %s22
      %p31 = scmp.eq.s32.totalorder %s14, 1
      %p32 = por %p30, %p31
      %p33 = scmp.ne.s32.totalorder %s22, %s23
      %p34 = scmp.eq.s32.totalorder %s14, 0
      %p35 = por %p33, %p34
      %p36 = scmp.ne.s32.totalorder %s22, %s23
      %p37 = scmp.eq.s32.totalorder %s15, 1
      %p38 = por %p36, %p37
      %p40 = scmp.ne.s32.totalorder %s23, %s39
      %p41 = scmp.eq.s32.totalorder %s15, 0
      %p42 = por %p40, %p41
      %s43 = ssub.s32 %s9, %s16
      %p44 = scmp.eq.s32.totalorder %s43, 0
      %s46 = sadd.s32 %s45, 1
      %s47 = scalar_select %p44, %s45, %s46
      %p50 = pneg %p44
      %p51 = scmp.eq.s32.totalorder %s9, 1
      %p52 = por %p50, %p51
      %p53 = scmp.ne.s32.totalorder %s45, %s48
      %p54 = scmp.eq.s32.totalorder %s9, 0
      %p55 = por %p53, %p54
      %p56 = scmp.ne.s32.totalorder %s45, %s48
      %p57 = scmp.eq.s32.totalorder %s14, 1
      %p58 = por %p56, %p57
      %p59 = scmp.ne.s32.totalorder %s48, %s49
      %p60 = scmp.eq.s32.totalorder %s14, 0
      %p61 = por %p59, %p60
      %p62 = scmp.ne.s32.totalorder %s48, %s49
      %p63 = scmp.eq.s32.totalorder %s15, 1
      %p64 = por %p62, %p63
      %p66 = scmp.ne.s32.totalorder %s49, %s65
      %p67 = scmp.eq.s32.totalorder %s15, 0
      %p68 = por %p66, %p67
      %s69 = ssub.s32 %s9, %s16
      %p70 = scmp.eq.s32.totalorder %s69, 0
      %s72 = sadd.s32 %s71, 1
      %s73 = scalar_select %p70, %s71, %s72
      %p76 = pneg %p70
      %p77 = scmp.eq.s32.totalorder %s9, 1
      %p78 = por %p76, %p77
      %p79 = scmp.ne.s32.totalorder %s71, %s74
      %p80 = scmp.eq.s32.totalorder %s9, 0
      %p81 = por %p79, %p80
      %p82 = scmp.ne.s32.totalorder %s71, %s74
      %p83 = scmp.eq.s32.totalorder %s14, 1
      %p84 = por %p82, %p83
      %p85 = scmp.ne.s32.totalorder %s74, %s75
      %p86 = scmp.eq.s32.totalorder %s14, 0
      %p87 = por %p85, %p86
      %p88 = scmp.ne.s32.totalorder %s74, %s75
      %p89 = scmp.eq.s32.totalorder %s15, 1
      %p90 = por %p88, %p89
      %p92 = scmp.ne.s32.totalorder %s75, %s91
      %p93 = scmp.eq.s32.totalorder %s15, 0
      %p94 = por %p92, %p93
      %s95 = ssub.s32 %s9, %s16
      %p96 = scmp.eq.s32.totalorder %s95, 0
      %s98 = sadd.s32 %s97, 1
      %s99 = scalar_select %p96, %s97, %s98
      %p102 = pneg %p96
      %p103 = scmp.eq.s32.totalorder %s9, 1
      %p104 = por %p102, %p103
      %p105 = scmp.ne.s32.totalorder %s97, %s100
      %p106 = scmp.eq.s32.totalorder %s9, 0
      %p107 = por %p105, %p106
      %p108 = scmp.ne.s32.totalorder %s97, %s100
      %p109 = scmp.eq.s32.totalorder %s14, 1
      %p110 = por %p108, %p109
      %p111 = scmp.ne.s32.totalorder %s100, %s101
      %p112 = scmp.eq.s32.totalorder %s14, 0
      %p113 = por %p111, %p112
      %p114 = scmp.ne.s32.totalorder %s100, %s101
      %p115 = scmp.eq.s32.totalorder %s15, 1
      %p116 = por %p114, %p115
      %p118 = scmp.ne.s32.totalorder %s101, %s117
      %p119 = scmp.eq.s32.totalorder %s15, 0
      %p120 = por %p118, %p119
      %p121 = scmp.le.s32.totalorder 1, %s9
      %p122 = scmp.lt.s32.totalorder %s9, 3
      %p123 = pnand %p121, %p122
      %p124 = pneg %p123
      // Predicated region
      $region9: #{_lambda_.17} parent=5 // pred_check
        _
      $region10: #{_lambda_.17} parent=5 // pred_check_branch
        %126 = sbr.rel (%p123) target = $region12
      $region11: #{_lambda_.17} parent=5 // pred_region
        %s127 = ssub.s32 %s9, 1
      $region12: #{_lambda_.17} parent=5 // pred_fallthru
        _
      %p128 = scmp.lt.s32.totalorder %s9, 2
      // Predicated region
      $region13: #{_lambda_.17} parent=5 // pred_check
        %p129 = pneg %p128
      $region14: #{_lambda_.17} parent=5 // pred_check_branch
        %131 = sbr.rel (%p129) target = $region16
      $region15: #{_lambda_.17} parent=5 // pred_region
        // Predicated region
        $region17: #{_lambda_.17} parent=15 // pred_check
          %p132 = pneg %p29
        $region18: #{_lambda_.17} parent=15 // pred_check_branch
          %134 = sbr.rel (%p132) target = $region20
        $region19: #{_lambda_.17} parent=15 // pred_region
          %s135 = sand.u32 %s19, 1
          %s136 = sand.u32 %s19, 1
          %s137 = smul.addr %s136, 16
          %s138 = scalar_lea.vmem [#allocation2], %s137
          %s139 = smul.u32 2, %s9
          %s140 = smul.addr %s139, 4
          %s141 = scalar_lea.vmem %s0, %s140
          // Predicated region
          $region21: #{_lambda_.17} parent=19 // pred_check
            _
          $region22: #{_lambda_.17} parent=19 // pred_check_branch
            %143 = sbr.rel (0) target = $region24
          $region23: #{_lambda_.17} parent=19 // pred_region
            // Predicated region
            $region25: #{_lambda_.17} parent=23 // pred_check
              _
            $region26: #{_lambda_.17} parent=23 // pred_check_branch
              %145 = sbr.rel (0) target = $region28
            $region27: #{_lambda_.17} parent=23 // pred_region
              // Predicated region
              $region40: #{_lambda_.17} parent=27 // pred_check
                _
              $region41: #{_lambda_.17} parent=27 // pred_check_branch
                %163 = sbr.rel (0) target = $region43
              $region42: #{_lambda_.17} parent=27 // pred_region
                loop: start=0, step=1, limit=1
                $region44: #{_lambda_.17} parent=42 // loop_pre_header
                  _
                $region45: #{_lambda_.17} parent=42 // loop_header
                  %s165 = sphi 0, %s169
                  %p166 = scmp.ge.s32.totalorder %s165, 1
                  %s170 = sphi %s141, %s141
                  %s171 = sphi %s138, %s138
                $region46: #{_lambda_.17} parent=42 // loop_header_branch
                  %168 = sbr.rel (%p166) target = $region50
                $region47: #{_lambda_.17} parent=42 // loop_body
                  %v172 = vld [vmem:[%s170] sm:$0xff]
                  %173 = vst [vmem:[%s171] sm:$0xff] %v172
                  %v174 = vld [vmem:[%s170 + $0x10] sm:$0xff]
                  %175 = vst [vmem:[%s171 + $0x8] sm:$0xff] %v174
                $region48: #{_lambda_.17} parent=42 // loop_footer
                  %s169 = sadd.s32 1, %s165
                $region49: #{_lambda_.17} parent=42 // loop_footer_branch
                  %164 = sbr.rel target = $region45
                $region50: #{_lambda_.17} parent=42 // loop_exit
                  _
              $region43: #{_lambda_.17} parent=27 // pred_fallthru
                _
              // Predicated region
              $region51: #{_lambda_.17} parent=27 // pred_check
                _
              $region52: #{_lambda_.17} parent=27 // pred_check_branch
                %177 = sbr.rel target = $region54
              $region53: #{_lambda_.17} parent=27 // pred_region
                _
              $region54: #{_lambda_.17} parent=27 // pred_fallthru
                _
            $region28: #{_lambda_.17} parent=23 // pred_fallthru
              _
            // Predicated region
            $region29: #{_lambda_.17} parent=23 // pred_check
              _
            $region30: #{_lambda_.17} parent=23 // pred_check_branch
              %147 = sbr.rel target = $region32
            $region31: #{_lambda_.17} parent=23 // pred_region
              %s149 = ssub.s32 256, 1
              loop: start=0, step=1, limit=1
              $region33: #{_lambda_.17} parent=31 // loop_pre_header
                _
              $region34: #{_lambda_.17} parent=31 // loop_header
                %s151 = sphi 0, %s155
                %p152 = scmp.ge.s32.totalorder %s151, 1
                %s156 = sphi %s141, %s141
                %s157 = sphi %s138, %s138
              $region35: #{_lambda_.17} parent=31 // loop_header_branch
                %154 = sbr.rel (%p152) target = $region39
              $region36: #{_lambda_.17} parent=31 // loop_body
                %v158 = vld [vmem:[%s156] sm:%s149]
                %159 = vst [vmem:[%s157] sm:%s149] %v158
                %v160 = vld [vmem:[%s156 + $0x10] sm:%s149]
                %161 = vst [vmem:[%s157 + $0x8] sm:%s149] %v160
              $region37: #{_lambda_.17} parent=31 // loop_footer
                %s155 = sadd.s32 1, %s151
              $region38: #{_lambda_.17} parent=31 // loop_footer_branch
                %150 = sbr.rel target = $region34
              $region39: #{_lambda_.17} parent=31 // loop_exit
                _
            $region32: #{_lambda_.17} parent=23 // pred_fallthru
              _
          $region24: #{_lambda_.17} parent=19 // pred_fallthru
            _
          %178 = vnop
        $region20: #{_lambda_.17} parent=15 // pred_fallthru
          _
        // Predicated region
        $region55: #{_lambda_.17} parent=15 // pred_check
          %p179 = pneg %p55
        $region56: #{_lambda_.17} parent=15 // pred_check_branch
          %181 = sbr.rel (%p179) target = $region58
        $region57: #{_lambda_.17} parent=15 // pred_region
          %s182 = smul.u32 2, %s9
          %p183 = scmp.lt.s32.totalorder %s182, 3
          %s184 = scalar_select %p183, %s182, 3
          %s185 = smul.addr %s184, 8
          %s186 = scalar_lea.vmem %s1, %s185
          %s187 = smul.u32 2, %s9
        $region58: #{_lambda_.17} parent=15 // pred_fallthru
          _
        // Predicated region
        $region59: #{_lambda_.17} parent=15 // pred_check
          %p188 = pneg %p81
        $region60: #{_lambda_.17} parent=15 // pred_check_branch
          %190 = sbr.rel (%p188) target = $region62
        $region61: #{_lambda_.17} parent=15 // pred_region
          %s191 = smul.u32 2, %s9
          %p192 = scmp.lt.s32.totalorder %s191, 3
          %s193 = scalar_select %p192, %s191, 3
          %s194 = smul.addr %s193, 8
          %s195 = scalar_lea.vmem %s2, %s194
          %s196 = smul.u32 2, %s9
        $region62: #{_lambda_.17} parent=15 // pred_fallthru
          _
      $region16: #{_lambda_.17} parent=5 // pred_fallthru
        _
      %p197 = scmp.le.s32.totalorder 1, %s9
      %p198 = scmp.lt.s32.totalorder %s9, 3
      %p199 = pnand %p197, %p198
      %p200 = pneg %p199
      // Predicated region
      $region63: #{_lambda_.17} parent=5 // pred_check
        _
      $region64: #{_lambda_.17} parent=5 // pred_check_branch
        %202 = sbr.rel (%p199) target = $region66
      $region65: #{_lambda_.17} parent=5 // pred_region
        %s203 = ssub.s32 %s9, 1
        %s204 = sand.u32 %s22, 1
        %s205 = sand.u32 %s22, 1
        %s206 = smul.addr %s205, 16
        %s207 = scalar_lea.vmem [#allocation2], %s206
        // Predicated region
        $region67: #{_lambda_.17} parent=65 // pred_check
          %p208 = pneg %p35
        $region68: #{_lambda_.17} parent=65 // pred_check_branch
          %210 = sbr.rel (%p208) target = $region70
        $region69: #{_lambda_.17} parent=65 // pred_region
          _
        $region70: #{_lambda_.17} parent=65 // pred_fallthru
          _
        %s211 = sand.u32 %s22, 1
        %s212 = sand.u32 %s22, 1
        %s213 = smul.addr %s212, 16
        %s214 = scalar_lea.vmem [#allocation2], %s213
        %p215 = pneg %p35
        %p216 = pneg %p32
        %s217 = smul.u32 2, %s14
        %p218 = scmp.lt.s32.totalorder %s217, 3
        %s219 = scalar_select %p218, %s217, 3
        %s220 = smul.addr %s219, 8
        %s221 = scalar_lea.vmem %s1, %s220
        %p222 = pneg %p61
        %p223 = pneg %p58
        %s224 = smul.u32 2, %s14
        %p225 = scmp.lt.s32.totalorder %s224, 3
        %s226 = scalar_select %p225, %s224, 3
        %s227 = smul.addr %s226, 8
        %s228 = scalar_lea.vmem %s2, %s227
        %p229 = pneg %p87
        %p230 = pneg %p84
        %p231 = pneg %p113
        %p232 = pneg %p110
        %s233 = sand.u32 %s100, 1
        %s234 = sand.u32 %s100, 1
        %s235 = smul.addr %s234, 32
        %s236 = scalar_lea.vmem [#allocation3], %s235
        %s237 = smul.u32 2, %s14
        %s238 = smul.u32 2, %s14
        %p239 = scmp.lt.s32.totalorder %s238, 3
        %s240 = scalar_select %p239, %s238, 3
        %s241 = smul.addr %s240, 8
        %s242 = scalar_lea.vmem %s1, %s241
        %s243 = smul.u32 2, %s14
        %s244 = smul.u32 2, %s14
        %p245 = scmp.lt.s32.totalorder %s244, 3
        %s246 = scalar_select %p245, %s244, 3
        %s247 = smul.addr %s246, 8
        %s248 = scalar_lea.vmem %s2, %s247
        %s249 = smul.u32 2, %s14
        %s250 = smul.u32 2, %s14
        %v251 = vld [vmem:[%s207] sm:$0xff]
        %v252 = vld [vmem:[%s207 + $0x8] sm:$0xff]
        %v253 = vunpack.c.l.bf16 %v251
        %v254 = vunpack.c.h.bf16 %v251
        %v255 = vunpack.c.l.bf16 %v252
        %v256 = vunpack.c.h.bf16 %v252
        %v257 = vlaneseq
        %v258 = vshrl.u32 %v257, 7
        %vm259 = vcmp.eq.s32.totalorder %v258, 2
        %vm260 = vcmp.eq.s32.totalorder %v258, 3
        %vm261 = vmor %vm259, %vm260
        %v262 = vsub.f32 0.0, %v253
        %v263 = vsub.f32 0.0, %v254
        %v264 = vsub.f32 0.0, %v255
        %v265 = vsub.f32 0.0, %v256
        %v266 = vmul.f32 %v262, 1.442695
        %v267 = vpow.pop %v266
        %v268 = vmul.f32 %v263, 1.442695
        %v269 = vpow.pop %v268
        %v270 = vmul.f32 %v264, 1.442695
        %v271 = vpow.pop %v270
        %v272 = vmul.f32 %v265, 1.442695
        %v273 = vpow.pop %v272
        %v274 = vadd.f32 %v267, 1.0
        %v275 = vadd.f32 %v269, 1.0
        %v276 = vadd.f32 %v271, 1.0
        %v277 = vadd.f32 %v273, 1.0
        %v278 = vrcp.pop %v274
        %v279 = vrcp.pop %v275
        %v280 = vrcp.pop %v276
        %v281 = vrcp.pop %v277
        %v282 = vsel %vm261, %v253, 0.0
        %v283 = vsel %vm261, %v254, 0.0
        %v284 = vsel %vm261, %v255, 0.0
        %v285 = vsel %vm261, %v256, 0.0
        %v286 = vmul.f32 %v282, 1.442695
        %v287 = vpow.pop %v286
        %v288 = vmul.f32 %v283, 1.442695
        %v289 = vpow.pop %v288
        %v290 = vmul.f32 %v284, 1.442695
        %v291 = vpow.pop %v290
        %v292 = vmul.f32 %v285, 1.442695
        %v293 = vpow.pop %v292
        %v294 = vsel %vm261, %v287, %v278
        %v295 = vsel %vm261, %v289, %v279
        %v296 = vsel %vm261, %v291, %v280
        %v297 = vsel %vm261, %v293, %v281
        %v298 = vld [vmem:[%s242] sm:$0xff]
        %v299 = vld [vmem:[%s242 + $0x8] sm:$0xff]
        %v300 = vadd.f32 %v294, %v298
        %v301 = vadd.f32 %v295, %v299
        %v302 = vadd.f32 %v296, %v298
        %v303 = vadd.f32 %v297, %v299
        %v304 = vld [vmem:[%s248] sm:$0xff]
        %v305 = vld [vmem:[%s248 + $0x8] sm:$0xff]
        %v306 = vmul.f32 %v300, %v304
        %v307 = vmul.f32 %v301, %v305
        %v308 = vmul.f32 %v302, %v304
        %v309 = vmul.f32 %v303, %v305
        %310 = vst [vmem:[%s236] sm:$0xff] %v306
        %311 = vst [vmem:[%s236 + $0x8] sm:$0xff] %v307
        %312 = vst [vmem:[%s236 + $0x10] sm:$0xff] %v308
        %313 = vst [vmem:[%s236 + $0x18] sm:$0xff] %v309
        %s314 = sand.u32 %s100, 1
        %s315 = sand.u32 %s100, 1
        %s316 = smul.addr %s315, 32
        %s317 = scalar_lea.vmem [#allocation3], %s316
        // Predicated region
        $region71: #{_lambda_.17} parent=65 // pred_check
          %p318 = pneg %p110
        $region72: #{_lambda_.17} parent=65 // pred_check_branch
          %320 = sbr.rel (%p318) target = $region74
        $region73: #{_lambda_.17} parent=65 // pred_region
          %s321 = smul.u32 2, %s14
          %s322 = smul.addr %s321, 8
          %s323 = scalar_lea.vmem %s3, %s322
          // Predicated region
          $region75: #{_lambda_.17} parent=73 // pred_check
            _
          $region76: #{_lambda_.17} parent=73 // pred_check_branch
            %325 = sbr.rel (0) target = $region78
          $region77: #{_lambda_.17} parent=73 // pred_region
            // Predicated region
            $region79: #{_lambda_.17} parent=77 // pred_check
              _
            $region80: #{_lambda_.17} parent=77 // pred_check_branch
              %327 = sbr.rel (0) target = $region82
            $region81: #{_lambda_.17} parent=77 // pred_region
              loop: start=0, step=1, limit=1
              $region83: #{_lambda_.17} parent=81 // loop_pre_header
                _
              $region84: #{_lambda_.17} parent=81 // loop_header
                %s329 = sphi 0, %s333
                %p330 = scmp.ge.s32.totalorder %s329, 1
                %s334 = sphi %s317, %s317
                %s335 = sphi %s323, %s323
              $region85: #{_lambda_.17} parent=81 // loop_header_branch
                %332 = sbr.rel (%p330) target = $region89
              $region86: #{_lambda_.17} parent=81 // loop_body
                %v336 = vld [vmem:[%s334] sm:$0xff]
                %337 = vst [vmem:[%s335] sm:$0xff] %v336
                %v338 = vld [vmem:[%s334 + $0x8] sm:$0xff]
                %339 = vst [vmem:[%s335 + $0x8] sm:$0xff] %v338
                %v340 = vld [vmem:[%s334 + $0x10] sm:$0xff]
                %341 = vst [vmem:[%s335 + $0x20] sm:$0xff] %v340
                %v342 = vld [vmem:[%s334 + $0x18] sm:$0xff]
                %343 = vst [vmem:[%s335 + $0x28] sm:$0xff] %v342
              $region87: #{_lambda_.17} parent=81 // loop_footer
                %s333 = sadd.s32 1, %s329
              $region88: #{_lambda_.17} parent=81 // loop_footer_branch
                %328 = sbr.rel target = $region84
              $region89: #{_lambda_.17} parent=81 // loop_exit
                _
            $region82: #{_lambda_.17} parent=77 // pred_fallthru
              _
            // Predicated region
            $region90: #{_lambda_.17} parent=77 // pred_check
              _
            $region91: #{_lambda_.17} parent=77 // pred_check_branch
              %345 = sbr.rel target = $region93
            $region92: #{_lambda_.17} parent=77 // pred_region
              _
            $region93: #{_lambda_.17} parent=77 // pred_fallthru
              _
          $region78: #{_lambda_.17} parent=73 // pred_fallthru
            _
          %346 = vnop
        $region74: #{_lambda_.17} parent=65 // pred_fallthru
          _
      $region66: #{_lambda_.17} parent=5 // pred_fallthru
        _
      %p347 = scmp.le.s32.totalorder 2, %s9
      // Predicated region
      $region94: #{_lambda_.17} parent=5 // pred_check
        %p348 = pneg %p347
      $region95: #{_lambda_.17} parent=5 // pred_check_branch
        %350 = sbr.rel (%p348) target = $region97
      $region96: #{_lambda_.17} parent=5 // pred_region
        %s351 = ssub.s32 %s9, 2
        // Predicated region
        $region98: #{_lambda_.17} parent=96 // pred_check
          %p352 = pneg %p116
        $region99: #{_lambda_.17} parent=96 // pred_check_branch
          %354 = sbr.rel (%p352) target = $region101
        $region100: #{_lambda_.17} parent=96 // pred_region
          %s355 = sand.u32 %s101, 1
          %s356 = sand.u32 %s101, 1
          %s357 = smul.addr %s356, 32
          %s358 = scalar_lea.vmem [#allocation3], %s357
        $region101: #{_lambda_.17} parent=96 // pred_fallthru
          _
      $region97: #{_lambda_.17} parent=5 // pred_fallthru
        _
    $region6: #{_lambda_.17} parent=1 // loop_footer
      %s13 = sadd.s32 1, %s9
    $region7: #{_lambda_.17} parent=1 // loop_footer_branch
      %8 = sbr.rel target = $region3
    $region8: #{_lambda_.17} parent=1 // loop_exit
      _

// kernel: _lambda_.13
$region0: #{_lambda_.13}
  #allocation0 [shape = 'u32[]', space=smem, size = 0x4, offset = 0x4, fixed_abs, tag = 'smem constant byte address 0x4 - core index']
  #allocation1 [shape = 'u32[144,128]{1,0:T(1,128)}', space=vmem, size = 0x12000, scoped, tag = 'internal scratch']
  %s0 = inlined_call_operand.vmem [shape: bf16[16,32], index: 0, kind: input, shape index: {}]
  %s1 = inlined_call_operand.vmem [shape: bf16[32,128], index: 1, kind: input, shape index: {}]
  %s2 = inlined_call_operand.vmem [shape: bf16[16,128], index: 2, kind: output, shape index: {}]
  %s3 = sld [smem:[#allocation0]]
  $region18: #{_lambda_.13} parent=0
    _
  %s5 = ssub.s32 1, %s3
  %s6 = scalar_select 0, %s5, %s3
  // Predicated region
  $region2: #{_lambda_.13} parent=0 // pred_check
    _
  $region3: #{_lambda_.13} parent=0 // pred_check_branch
    %8 = sbr.rel (0) target = $region5
  $region4: #{_lambda_.13} parent=0 // pred_region
    _
  $region5: #{_lambda_.13} parent=0 // pred_fallthru
    _
  // Predicated region
  $region6: #{_lambda_.13} parent=0 // pred_check
    _
  $region7: #{_lambda_.13} parent=0 // pred_check_branch
    %10 = sbr.rel (0) target = $region9
  $region8: #{_lambda_.13} parent=0 // pred_region
    _
  $region9: #{_lambda_.13} parent=0 // pred_fallthru
    _
  %v12 = vld [vmem:[%s0] sm:$0xf]
  %v13 = vld [vmem:[%s0 + $0x4] sm:$0xf]
  %v14 = vld [vmem:[%s1] sm:$0xf]
  %v15 = vld [vmem:[%s1 + $0x4] sm:$0xf]
  %v16 = vld [vmem:[%s1 + $0x8] sm:$0xf]
  %v17 = vld [vmem:[%s1 + $0xc] sm:$0xf]
  %v20 = vunpack.c.l.b16 %v12
  %v21 = vunpack.c.l.b16 %v13
  %v22 = vpack.c.b16 %v21, %v20
  %v27 = vunpack.c.l.b16 %v14
  %v28 = vunpack.c.l.b16 %v15
  %v29 = vunpack.c.l.b16 %v16
  %v30 = vunpack.c.l.b16 %v17
  %v31 = vpack.c.b16 %v28, %v27
  %v32 = vpack.c.b16 %v30, %v29
  %vm35 = vcmask 261120
  %v37 = vsel %vm35, %v22, 0
  %39 = vmatprep.subr.bf16.mxu0 0
  %40 = vmatpush1.bf16.msra.mxu0 0
  %41 = vmatprep.subr.bf16.mxu0 0
  %42 = vmatpush1.bf16.msra.mxu0 0
  %43 = vmatprep.subr.bf16.mxu0 0
  %44 = vmatpush1.bf16.msra.mxu0 0
  %45 = vmatprep.subr.bf16.mxu0 0
  %46 = vmatpush1.bf16.msra.mxu0 0
  %47 = vmatprep.subr.bf16.mxu0 0
  %48 = vmatpush1.bf16.msra.mxu0 0
  %49 = vmatprep.subr.bf16.mxu0 0
  %50 = vmatpush1.bf16.msra.mxu0 0
  %51 = vmatprep.subr.bf16.mxu0 0
  %52 = vmatpush1.bf16.msra.mxu0 %v32
  %53 = vmatprep.subr.bf16.mxu0 0
  %54 = vmatpush1.bf16.msra.mxu0 %v31
  %55 = vmatprep.subr.bf16.mxu0 0
  %56 = vmatpush2.bf16.msra.mxu0 0
  %57 = vmatprep.subr.bf16.mxu0 0
  %58 = vmatpush2.bf16.msra.mxu0 0
  %59 = vmatprep.subr.bf16.mxu0 0
  %60 = vmatpush2.bf16.msra.mxu0 0
  %61 = vmatprep.subr.bf16.mxu0 0
  %62 = vmatpush2.bf16.msra.mxu0 0
  %63 = vmatprep.subr.bf16.mxu0 0
  %64 = vmatpush2.bf16.msra.mxu0 0
  %65 = vmatprep.subr.bf16.mxu0 0
  %66 = vmatpush2.bf16.msra.mxu0 0
  %67 = vmatprep.subr.bf16.mxu0 0
  %68 = vmatpush2.bf16.msra.mxu0 0
  %69 = vmatprep.subr.bf16.mxu0 0
  %70 = vmatpush2.bf16.msra.mxu0 0
  %71 = vmatprep.mubr.bf16.mxu0 0
  %72 = vmatmul.mubr.bf16.gmra.mxu0 %v37
  %v73 = vpop.f32.mrf.mxu0
  %v74 = vadd.f32 0.0, %v73
  %v75 = vpop.f32.mrf.mxu0
  %v76 = vpop.f32.mrf.mxu0
  %v77 = vadd.f32 0.0, %v76
  %v78 = vpop.f32.mrf.mxu0
  %79 = vdwg.mxu0
  %v80 = vpack.c.bf16 %v77, %v74
  %v82 = vunpack.c.l.b16 %v80
  %v83 = vunpack.c.h.b16 %v80
  %v84 = vpack.c.b16 %v82, %v82
  %v85 = vpack.c.b16 %v83, %v83
  %88 = vst [vmem:[%s2] sm:$0xf] %v84
  %89 = vst [vmem:[%s2 + $0x4] sm:$0xf] %v85
  // Predicated region
  $region10: #{_lambda_.13} parent=0 // pred_check
    _
  $region11: #{_lambda_.13} parent=0 // pred_check_branch
    %91 = sbr.rel (0) target = $region13
  $region12: #{_lambda_.13} parent=0 // pred_region
    _
  $region13: #{_lambda_.13} parent=0 // pred_fallthru
    _
  // Predicated region
  $region14: #{_lambda_.13} parent=0 // pred_check
    _
  $region15: #{_lambda_.13} parent=0 // pred_check_branch
    %93 = sbr.rel (0) target = $region17
  $region16: #{_lambda_.13} parent=0 // pred_region
    _
  $region17: #{_lambda_.13} parent=0 // pred_fallthru
    _

// kernel: _lambda_.14
$region0: #{_lambda_.14}
  #allocation0 [shape = 'u32[]', space=smem, size = 0x4, offset = 0x4, fixed_abs, tag = 'smem constant byte address 0x4 - core index']
  #allocation1 [shape = 'u32[144,128]{1,0:T(1,128)}', space=vmem, size = 0x12000, scoped, tag = 'internal scratch']
  %s0 = inlined_call_operand.vmem [shape: bf16[2,8,128], index: 0, kind: input, shape index: {}]
  %s1 = inlined_call_operand.vmem [shape: f32[8,128], index: 1, kind: input, shape index: {}]
  %s2 = inlined_call_operand.vmem [shape: f32[8,128], index: 2, kind: input, shape index: {}]
  %s3 = inlined_call_operand.vmem [shape: f32[2,8,128], index: 3, kind: output, shape index: {}]
  %s4 = sld [smem:[#allocation0]]
  $region22: #{_lambda_.14} parent=0
    _
  %s6 = ssub.s32 1, %s4
  %s7 = scalar_select 0, %s6, %s4
  // Predicated region
  $region2: #{_lambda_.14} parent=0 // pred_check
    _
  $region3: #{_lambda_.14} parent=0 // pred_check_branch
    %9 = sbr.rel (0) target = $region5
  $region4: #{_lambda_.14} parent=0 // pred_region
    _
  $region5: #{_lambda_.14} parent=0 // pred_fallthru
    _
  // Predicated region
  $region6: #{_lambda_.14} parent=0 // pred_check
    _
  $region7: #{_lambda_.14} parent=0 // pred_check_branch
    %11 = sbr.rel (0) target = $region9
  $region8: #{_lambda_.14} parent=0 // pred_region
    _
  $region9: #{_lambda_.14} parent=0 // pred_fallthru
    _
  // Predicated region
  $region10: #{_lambda_.14} parent=0 // pred_check
    _
  $region11: #{_lambda_.14} parent=0 // pred_check_branch
    %13 = sbr.rel (0) target = $region13
  $region12: #{_lambda_.14} parent=0 // pred_region
    _
  $region13: #{_lambda_.14} parent=0 // pred_fallthru
    _
  %v14 = vld [vmem:[%s0] sm:$0xf]
  %v15 = vld [vmem:[%s0 + $0x4] sm:$0xf]
  %v16 = vunpack.c.l.bf16 %v14
  %v17 = vunpack.c.l.bf16 %v15
  %v18 = vlaneseq
  %v19 = vshrl.u32 %v18, 7
  %vm20 = vcmp.eq.s32.totalorder %v19, 2
  %vm21 = vcmp.eq.s32.totalorder %v19, 3
  %vm22 = vmor %vm20, %vm21
  %v23 = vsub.f32 0.0, %v16
  %v24 = vsub.f32 0.0, %v17
  %v25 = vmul.f32 %v23, 1.442695
  %v26 = vpow.pop %v25
  %v27 = vmul.f32 %v24, 1.442695
  %v28 = vpow.pop %v27
  %v29 = vadd.f32 %v26, 1.0
  %v30 = vadd.f32 %v28, 1.0
  %v31 = vrcp.pop %v29
  %v32 = vrcp.pop %v30
  %v33 = vsel %vm22, %v16, 0.0
  %v34 = vsel %vm22, %v17, 0.0
  %v35 = vmul.f32 %v33, 1.442695
  %v36 = vpow.pop %v35
  %v37 = vmul.f32 %v34, 1.442695
  %v38 = vpow.pop %v37
  %v39 = vsel %vm22, %v36, %v31
  %v40 = vsel %vm22, %v38, %v32
  %v41 = vld [vmem:[%s1] sm:$0xff]
  %v42 = vadd.f32 %v39, %v41
  %v43 = vadd.f32 %v40, %v41
  %v44 = vld [vmem:[%s2] sm:$0xff]
  %v45 = vmul.f32 %v42, %v44
  %v46 = vmul.f32 %v43, %v44
  %47 = vst [vmem:[%s3] sm:$0xff] %v45
  %48 = vst [vmem:[%s3 + $0x8] sm:$0xff] %v46
  // Predicated region
  $region14: #{_lambda_.14} parent=0 // pred_check
    _
  $region15: #{_lambda_.14} parent=0 // pred_check_branch
    %50 = sbr.rel (0) target = $region17
  $region16: #{_lambda_.14} parent=0 // pred_region
    _
  $region17: #{_lambda_.14} parent=0 // pred_fallthru
    _
  // Predicated region
  $region18: #{_lambda_.14} parent=0 // pred_check
    _
  $region19: #{_lambda_.14} parent=0 // pred_check_branch
    %52 = sbr.rel (0) target = $region21
  $region20: #{_lambda_.14} parent=0 // pred_region
    _
  $region21: #{_lambda_.14} parent=0 // pred_fallthru
    _

</llo_original>
